<compile_context>
chip_gen: v5e
topology: v5e:2x2
jax: 0.10.0
libtpu: 0.0.40
codegen_flags: <defaults>
</compile_context>

<pallas_src>
import functools

import jax
import jax.numpy as jnp
from jax import lax
from jax.experimental import pallas as pl
from jax.experimental.pallas import tpu as pltpu


# ------------------------------ small helpers ------------------------------- #
def _round_up(x, m):
    return ((x + m - 1) // m) * m


def _pick_tile(dim, target, align):
    """Largest multiple-of-`align` divisor of `dim` that is <= target, else full dim."""
    if dim <= target:
        return dim
    t = (target // align) * align
    while t >= align:
        if dim % t == 0:
            return t
        t -= align
    return dim


def _tpu_vmem_capacity():
    try:
        return int(getattr(pltpu.get_tpu_info(), "vmem_capacity_bytes", 64 * 1024 * 1024))
    except Exception:  # conservative fallback (older jax / non-TPU tracing)
        return 64 * 1024 * 1024


def _vmem_limit_bytes():
    cap = _tpu_vmem_capacity()
    # leave headroom for Mosaic internal scratch on 64-MiB parts (v7x),
    # allow bigger tiles on 128-MiB parts (v5e/v6e).
    return int(max(32 * 1024 * 1024, min(cap - 12 * 1024 * 1024, 100 * 1024 * 1024)))


# --------------------- fused / batched tiled linear ------------------------- #
def _batched_linear_kernel(x_ref, w_ref, b_ref, o_ref, acc_ref):
    # x: (1, tm, tk) f32/bf16, w: (1, tk, tn) bf16, b: (1, 1, tn) f32, o: (1, tm, tn) bf16
    k = pl.program_id(3)

    @pl.when(k == 0)
    def _():
        acc_ref[...] = jnp.zeros_like(acc_ref)

    acc_ref[...] += jnp.dot(x_ref[0].astype(jnp.bfloat16), w_ref[0],
                            preferred_element_type=jnp.float32)

    @pl.when(k == pl.num_programs(3) - 1)
    def _():
        o_ref[0] = (acc_ref[...] + b_ref[0].astype(jnp.float32)).astype(o_ref.dtype)


def batched_linear(xs, ws, bs):
    """xs: [G, N, Din], ws: [G, Din, Dout] (bf16), bs: [G, Dout] (f32) -> [G, N, Dout] bf16."""
    g, n, din = xs.shape
    dout = ws.shape[2]
    big_vmem = _tpu_vmem_capacity() > 64 * 1024 * 1024
    tm_target = 512 if big_vmem else 256                 # multiple of 16 (bf16 sublane pack)
    tn = _pick_tile(dout, 1024 if big_vmem else 512, 128)
    tk = _pick_tile(din, 512, 128)
    tm = min(_round_up(n, 16), tm_target)
    n_pad = _round_up(n, tm)
    if n_pad != n:                                       # harden awkward B*S row counts
        xs = jnp.pad(xs, ((0, 0), (0, n_pad - n), (0, 0)))

    grid = (g, n_pad // tm, dout // tn, din // tk)
    cost = pl.CostEstimate(
        flops=2 * g * n_pad * din * dout,
        transcendentals=0,
        bytes_accessed=int(g * n_pad * din * xs.dtype.itemsize
                           + g * din * dout * 2 + g * dout * 4 + g * n_pad * dout * 2),
    )
    out = pl.pallas_call(
        _batched_linear_kernel,
        out_shape=jax.ShapeDtypeStruct((g, n_pad, dout), jnp.bfloat16),
        grid_spec=pltpu.PrefetchScalarGridSpec(
            num_scalar_prefetch=0,
            grid=grid,
            in_specs=[
                pl.BlockSpec((1, tm, tk), lambda gi, mi, ni, ki: (gi, mi, ki)),
                pl.BlockSpec((1, tk, tn), lambda gi, mi, ni, ki: (gi, ki, ni)),
                pl.BlockSpec((1, 1, tn), lambda gi, mi, ni, ki: (gi, 0, ni)),
            ],
            out_specs=pl.BlockSpec((1, tm, tn), lambda gi, mi, ni, ki: (gi, mi, ni)),
            scratch_shapes=[pltpu.VMEM((tm, tn), jnp.float32)],
        ),
        compiler_params=pltpu.CompilerParams(
            dimension_semantics=("parallel", "parallel", "parallel", "arbitrary"),
            vmem_limit_bytes=_vmem_limit_bytes(),
        ),
        cost_estimate=cost,
    )(xs, ws, bs.reshape(g, 1, dout))
    return out[:, :n] if n_pad != n else out


# -------------------- attention + fused output projection ------------------- #
def _pick_heads_per_group(num_heads, head_dim, tq, sk, budget_bytes):
    """Largest head-group whose width is lane aligned (or all heads) that fits budget."""
    cands = [g for g in range(1, num_heads + 1)
             if num_heads % g == 0 and ((g * head_dim) % 128 == 0 or g == num_heads)]
    for g in sorted(cands, reverse=True):
        gw = g * head_dim
        vmem = (2 * g * tq * sk * 4          # double-buffered f32 attn block
                + 2 * 2 * sk * gw * 2        # double-buffered bf16 K and V group slabs
                + 2 * tq * gw * 2            # double-buffered bf16 Q group slab
                + tq * gw * 4                # ctx scratch
                + tq * num_heads * head_dim * 4)  # out-projection accumulator
        if vmem <= budget_bytes:
            return g
    return min(cands)


def _attention_kernel(q_ref, k_ref, v_ref, wo_ref, bo_ref, o_ref, attn_ref,
                      ctx_ref, acc_ref, *, heads_per_group, head_dim):
    # q: (1, tq, gw) bf16 (scale folded in), k/v: (1, Sk, gw) bf16,
    # wo: (gw, D) bf16, bo: (1, D) f32, o: (1, tq, D) f32, attn: (1, hpg, tq, Sk) f32
    hg = pl.program_id(2)

    @pl.when(hg == 0)
    def _():
        acc_ref[...] = jnp.zeros_like(acc_ref)

    for i in range(heads_per_group):          # static loop; all slice offsets constant
        lo = i * head_dim
        hi = lo + head_dim
        q_h = q_ref[0, :, lo:hi]              # slice the VMEM refs, not loaded vregs
        k_h = k_ref[0, :, lo:hi]
        v_h = v_ref[0, :, lo:hi]
        s = lax.dot_general(q_h, k_h, (((1,), (1,)), ((), ())),
                            preferred_element_type=jnp.float32)       # [tq, Sk]
        m = jnp.max(s, axis=-1, keepdims=True)
        e = jnp.exp(s - m)
        p = e / jnp.sum(e, axis=-1, keepdims=True)                    # exact softmax
        attn_ref[0, i] = p.astype(attn_ref.dtype)
        ctx_ref[:, lo:hi] = jnp.dot(p.astype(jnp.bfloat16), v_h,
                                    preferred_element_type=jnp.float32)

    # fused output projection for this head group: acc += ctx_group @ Wo[group rows, :]
    acc_ref[...] += jnp.dot(ctx_ref[...].astype(jnp.bfloat16), wo_ref[...],
                            preferred_element_type=jnp.float32)

    @pl.when(hg == pl.num_programs(2) - 1)
    def _():
        o_ref[0] = (acc_ref[...] + bo_ref[...].astype(jnp.float32)).astype(o_ref.dtype)


def attention_with_out_proj(qp, kp, vp, wo, bo, num_heads):
    """qp: [B,Sq,D] bf16, kp/vp: [B,Sk,D] bf16, wo: [D,D] bf16, bo: [D] f32."""
    b, sq, d = qp.shape
    sk = kp.shape[1]
    hd = d // num_heads
    vmem_limit = _vmem_limit_bytes()
    small_vmem = _tpu_vmem_capacity() <= 64 * 1024 * 1024
    tq = min(_round_up(sq, 8), 128 if small_vmem else 256)
    sq_pad = _round_up(sq, tq)
    if sq_pad != sq:
        qp = jnp.pad(qp, ((0, 0), (0, sq_pad - sq), (0, 0)))

    hpg = _pick_heads_per_group(num_heads, hd, tq, sk, vmem_limit // 2)
    gw = hpg * hd
    n_groups = num_heads // hpg
    grid = (b, sq_pad // tq, n_groups)

    kernel = functools.partial(_attention_kernel, heads_per_group=hpg, head_dim=hd)
    cost = pl.CostEstimate(
        flops=4 * b * num_heads * sq_pad * sk * hd + 2 * b * sq_pad * d * d,
        transcendentals=b * num_heads * sq_pad * sk,
        bytes_accessed=int(2 * (b * sq_pad * d + 2 * b * sk * d) + 2 * d * d
                           + 4 * (b * sq_pad * d + b * num_heads * sq_pad * sk)),
    )
    out, attn = pl.pallas_call(
        kernel,
        out_shape=(
            jax.ShapeDtypeStruct((b, sq_pad, d), jnp.float32),
            jax.ShapeDtypeStruct((b, num_heads, sq_pad, sk), jnp.float32),
        ),
        grid_spec=pltpu.PrefetchScalarGridSpec(
            num_scalar_prefetch=0,
            grid=grid,
            in_specs=[
                pl.BlockSpec((1, tq, gw), lambda bi, qi, hg: (bi, qi, hg)),
                pl.BlockSpec((1, sk, gw), lambda bi, qi, hg: (bi, 0, hg)),
                pl.BlockSpec((1, sk, gw), lambda bi, qi, hg: (bi, 0, hg)),
                pl.BlockSpec((gw, d), lambda bi, qi, hg: (hg, 0)),
                pl.BlockSpec((1, d), lambda bi, qi, hg: (0, 0)),
            ],
            out_specs=[
                pl.BlockSpec((1, tq, d), lambda bi, qi, hg: (bi, qi, 0)),
                pl.BlockSpec((1, hpg, tq, sk), lambda bi, qi, hg: (bi, hg, qi, 0)),
            ],
            scratch_shapes=[
                pltpu.VMEM((tq, gw), jnp.float32),    # per-group context (per-head writes)
                pltpu.VMEM((tq, d), jnp.float32),     # fused out-projection accumulator
            ],
        ),
        compiler_params=pltpu.CompilerParams(
            dimension_semantics=("parallel", "parallel", "arbitrary"),
            vmem_limit_bytes=vmem_limit,
        ),
        cost_estimate=cost,
    )(qp, kp, vp, wo, bo.reshape(1, d))

    if sq_pad != sq:
        out = out[:, :sq]
        attn = attn[:, :, :sq]
    return out, attn


# ------------------------------ module wrapper ------------------------------ #
def init_params(key, dim):
    ks = jax.random.split(key, 8)

    def lin(kw, kb):
        w = jax.random.normal(kw, (dim, dim), jnp.float32) * 0.02   # [Din, Dout]
        b = jax.random.normal(kb, (dim,), jnp.float32) * 0.02
        return w, b

    wq, bq = lin(ks[0], ks[1])
    wk, bk = lin(ks[2], ks[3])
    wv, bv = lin(ks[4], ks[5])
    wo, bo = lin(ks[6], ks[7])
    return {
        "qkv_w": jnp.stack([wq, wk, wv]).astype(jnp.bfloat16),   # bf16 MXU weights
        "qkv_b": jnp.stack([bq, bk, bv]),                        # f32 biases
        "out_w": wo.astype(jnp.bfloat16),
        "out_b": bo,
    }


def multi_head_cross_attention(params, q, k, v, num_heads):
    """q: [B, Sq, D], k/v: [B, Sk, D] -> (out [B, Sq, D] f32, attn [B, H, Sq, Sk] f32)."""
    b, sq, d = q.shape
    sk = k.shape[1]
    hd = d // num_heads
    scale = float(hd) ** -0.5

    # fold the softmax scale into the Q projection once (weights + bias)
    qkv_w = params["qkv_w"]
    qkv_b = params["qkv_b"]
    wq_scaled = (qkv_w[0].astype(jnp.float32) * scale).astype(qkv_w.dtype)
    qkv_w = qkv_w.at[0].set(wq_scaled)
    qkv_b = qkv_b.at[0].multiply(scale)

    q2 = q.reshape(b * sq, d)
    k2 = k.reshape(b * sk, d)
    v2 = v.reshape(b * sk, d)

    if sq == sk:
        # one fused pallas_call for all three projections
        proj = batched_linear(jnp.stack([q2, k2, v2]), qkv_w, qkv_b)
        qp, kp, vp = proj[0], proj[1], proj[2]
    else:
        qp = batched_linear(q2[None], qkv_w[0:1], qkv_b[0:1])[0]
        kvp = batched_linear(jnp.stack([k2, v2]), qkv_w[1:3], qkv_b[1:3])
        kp, vp = kvp[0], kvp[1]

    # attention + fused output projection (no separate out-proj pallas_call,
    # no host-side head transposes: kernel consumes / produces [B, S, D] directly)
    out, attn = attention_with_out_proj(
        qp.reshape(b, sq, d), kp.reshape(b, sk, d), vp.reshape(b, sk, d),
        params["out_w"], params["out_b"], num_heads)
    return out, attn


# ---------------------------- pure-JAX reference ---------------------------- #
def _reference(params, q, k, v, num_heads):
    b, sq, d = q.shape
    sk = k.shape[1]
    hd = d // num_heads
    scale = float(hd) ** -0.5
    wq, wk, wv = [params["qkv_w"][i].astype(jnp.float32) for i in range(3)]
    bq, bk, bv = params["qkv_b"][0], params["qkv_b"][1], params["qkv_b"][2]
    qp = q @ wq + bq
    kp = k @ wk + bk
    vp = v @ wv + bv

    def heads(x, s):
        return x.reshape(b, s, num_heads, hd).transpose(0, 2, 1, 3)

    qh, kh, vh = heads(qp, sq), heads(kp, sk), heads(vp, sk)
    s = jnp.einsum("bhqd,bhkd->bhqk", qh, kh) * scale
    a = jax.nn.softmax(s, axis=-1)
    o = jnp.einsum("bhqk,bhkd->bhqd", a, vh)
    o = o.transpose(0, 2, 1, 3).reshape(b, sq, d)
    o = o @ params["out_w"].astype(jnp.float32) + params["out_b"]
    return o, a


# ------------------------------------ main ---------------------------------- #
if __name__ == "__main__":
    key = jax.random.PRNGKey(0)
    k_param, k_q, k_k, k_v = jax.random.split(key, 4)

    B, Sq, Sk, D, H = 2, 8, 8, 32, 8

    params = init_params(k_param, D)
    q = jax.random.normal(k_q, (B, Sq, D), jnp.float32)
    k = jax.random.normal(k_k, (B, Sk, D), jnp.float32)
    v = jax.random.normal(k_v, (B, Sk, D), jnp.float32)

    fwd = jax.jit(functools.partial(multi_head_cross_attention, num_heads=H))
    out, attn = fwd(params, q, k, v)
    out = jax.block_until_ready(out)
    attn = jax.block_until_ready(attn)

    assert out.shape == (B, Sq, D)
    assert attn.shape == (B, H, Sq, Sk)
    # exact softmax: rows sum to 1 to f32 precision
    assert bool(jnp.allclose(jnp.sum(attn, axis=-1), 1.0, atol=1e-4))

    # compare against a pure-JAX f32 reference (bf16 weights/intermediates -> ~1e-2 tol)
    out_ref, attn_ref = _reference(params, q, k, v, H)
    assert bool(jnp.allclose(out, out_ref, rtol=2e-2, atol=2e-2))
    assert bool(jnp.allclose(attn, attn_ref, rtol=2e-2, atol=2e-2))

    print("KERNEL_OK")
</pallas_src>

<mosaic_0001>
module attributes {stable_mosaic.version = 11 : i64} {
  func.func @_batched_linear_kernel(%arg0: i32, %arg1: i32, %arg2: i32, %arg3: i32, %arg4: memref<1x16x32xf32, #tpu.memory_space<vmem>>, %arg5: memref<1x32x32xbf16, #tpu.memory_space<vmem>>, %arg6: memref<1x1x32xf32, #tpu.memory_space<vmem>>, %arg7: memref<1x16x32xbf16, #tpu.memory_space<vmem>>, %arg8: memref<16x32xf32, #tpu.memory_space<vmem>>) attributes {dimension_semantics = [#tpu.dimension_semantics<parallel>, #tpu.dimension_semantics<parallel>, #tpu.dimension_semantics<parallel>, #tpu.dimension_semantics<arbitrary>], iteration_bounds = array<i64: 3, 1, 1, 1>, scalar_prefetch = 0 : i64, scratch_operands = 1 : i64, tpu.core_type = #tpu.core_type<tc>, window_params = [{transform_indices = @transform_0, window_bounds = array<i64: 1, 16, 32>}, {transform_indices = @transform_1, window_bounds = array<i64: 1, 32, 32>}, {transform_indices = @transform_2, window_bounds = array<i64: 1, 1, 32>}, {transform_indices = @transform_3, window_bounds = array<i64: 1, 16, 32>}]} {
    %c0_i32 = arith.constant 0 : i32
    %0 = arith.cmpi eq, %arg3, %c0_i32 : i32
    %1 = arith.extui %0 : i1 to i32
    %c0_i32_0 = arith.constant 0 : i32
    %2 = arith.cmpi ne, %1, %c0_i32_0 : i32
    scf.if %2 {
      %cst_12 = arith.constant 0.000000e+00 : f32
      %15 = vector.broadcast %cst_12 : f32 to vector<16x32xf32>
      %c0_13 = arith.constant 0 : index
      %c0_14 = arith.constant 0 : index
      %16 = vector.load %arg8[%c0_13, %c0_14] : memref<16x32xf32, #tpu.memory_space<vmem>>, vector<16x32xf32>
      tpu.vector_store %arg8[%c0_13, %c0_14], %15 {strides = array<i32>} : memref<16x32xf32, #tpu.memory_space<vmem>>, vector<16x32xf32>,
    } else {
    }
    %c0 = arith.constant 0 : index
    %c0_1 = arith.constant 0 : index
    %3 = vector.load %arg8[%c0, %c0_1] : memref<16x32xf32, #tpu.memory_space<vmem>>, vector<16x32xf32>
    %c0_2 = arith.constant 0 : index
    %c0_3 = arith.constant 0 : index
    %c0_4 = arith.constant 0 : index
    %4 = vector.load %arg4[%c0_2, %c0_3, %c0_4] : memref<1x16x32xf32, #tpu.memory_space<vmem>>, vector<1x16x32xf32>
    %5 = vector.shape_cast %4 : vector<1x16x32xf32> to vector<16x32xf32>
    %6 = arith.truncf %5 : vector<16x32xf32> to vector<16x32xbf16>
    %c0_5 = arith.constant 0 : index
    %c0_6 = arith.constant 0 : index
    %c0_7 = arith.constant 0 : index
    %7 = vector.load %arg5[%c0_5, %c0_6, %c0_7] : memref<1x32x32xbf16, #tpu.memory_space<vmem>>, vector<1x32x32xbf16>
    %8 = vector.shape_cast %7 : vector<1x32x32xbf16> to vector<32x32xbf16>
    %cst = arith.constant dense<0.000000e+00> : vector<16x32xf32>
    %9 = tpu.matmul %6, %8, %cst {dimension_numbers = #tpu.dot_dimension_numbers<[1], [0], [0], [1], [0, 0, 1, 1], [], []>} : vector<16x32xbf16>, vector<32x32xbf16>, vector<16x32xf32> -> vector<16x32xf32>
    %10 = arith.addf %3, %9 : vector<16x32xf32>
    %c0_8 = arith.constant 0 : index
    %c0_9 = arith.constant 0 : index
    %11 = vector.load %arg8[%c0_8, %c0_9] : memref<16x32xf32, #tpu.memory_space<vmem>>, vector<16x32xf32>
    tpu.vector_store %arg8[%c0_8, %c0_9], %10 {strides = array<i32>} : memref<16x32xf32, #tpu.memory_space<vmem>>, vector<16x32xf32>,
    %c0_i32_10 = arith.constant 0 : i32
    %12 = arith.cmpi eq, %arg3, %c0_i32_10 : i32
    %13 = arith.extui %12 : i1 to i32
    %c0_i32_11 = arith.constant 0 : i32
    %14 = arith.cmpi ne, %13, %c0_i32_11 : i32
    scf.if %14 {
      %c0_12 = arith.constant 0 : index
      %c0_13 = arith.constant 0 : index
      %15 = vector.load %arg8[%c0_12, %c0_13] : memref<16x32xf32, #tpu.memory_space<vmem>>, vector<16x32xf32>
      %c0_14 = arith.constant 0 : index
      %c0_15 = arith.constant 0 : index
      %c0_16 = arith.constant 0 : index
      %16 = vector.load %arg6[%c0_14, %c0_15, %c0_16] : memref<1x1x32xf32, #tpu.memory_space<vmem>>, vector<1x1x32xf32>
      %17 = vector.shape_cast %16 : vector<1x1x32xf32> to vector<1x32xf32>
      %18 = vector.broadcast %17 : vector<1x32xf32> to vector<16x32xf32>
      %19 = arith.addf %15, %18 : vector<16x32xf32>
      %20 = arith.truncf %19 : vector<16x32xf32> to vector<16x32xbf16>
      %c0_17 = arith.constant 0 : index
      %c0_18 = arith.constant 0 : index
      %c0_19 = arith.constant 0 : index
      %21 = vector.load %arg7[%c0_17, %c0_18, %c0_19] : memref<1x16x32xbf16, #tpu.memory_space<vmem>>, vector<1x16x32xbf16>
      %22 = vector.shape_cast %21 : vector<1x16x32xbf16> to vector<16x32xbf16>
      %23 = vector.shape_cast %20 : vector<16x32xbf16> to vector<1x16x32xbf16>
      tpu.vector_store %arg7[%c0_17, %c0_18, %c0_19], %23 {strides = array<i32>} : memref<1x16x32xbf16, #tpu.memory_space<vmem>>, vector<1x16x32xbf16>,
    } else {
    }
    return
  }
  func.func @transform_0(%arg0: i32, %arg1: i32, %arg2: i32, %arg3: i32) -> (i32, i32, i32) {
    %c0_i32 = arith.constant 0 : i32
    return %arg0, %arg1, %arg3 : i32, i32, i32
  }
  func.func @transform_1(%arg0: i32, %arg1: i32, %arg2: i32, %arg3: i32) -> (i32, i32, i32) {
    %c0_i32 = arith.constant 0 : i32
    return %arg0, %arg3, %arg2 : i32, i32, i32
  }
  func.func @transform_2(%arg0: i32, %arg1: i32, %arg2: i32, %arg3: i32) -> (i32, i32, i32) {
    %c0_i32 = arith.constant 0 : i32
    %c0_i32_0 = arith.constant 0 : i32
    return %arg0, %c0_i32, %arg2 : i32, i32, i32
  }
  func.func @transform_3(%arg0: i32, %arg1: i32, %arg2: i32, %arg3: i32) -> (i32, i32, i32) {
    %c0_i32 = arith.constant 0 : i32
    return %arg0, %arg1, %arg2 : i32, i32, i32
  }
}

module attributes {stable_mosaic.version = 11 : i64} {
  func.func @_attention_kernel(%arg0: i32, %arg1: i32, %arg2: i32, %arg3: memref<1x8x32xbf16, #tpu.memory_space<vmem>>, %arg4: memref<1x8x32xbf16, #tpu.memory_space<vmem>>, %arg5: memref<1x8x32xbf16, #tpu.memory_space<vmem>>, %arg6: memref<32x32xbf16, #tpu.memory_space<vmem>>, %arg7: memref<1x32xf32, #tpu.memory_space<vmem>>, %arg8: memref<1x8x32xf32, #tpu.memory_space<vmem>>, %arg9: memref<1x8x8x8xf32, #tpu.memory_space<vmem>>, %arg10: memref<8x32xf32, #tpu.memory_space<vmem>>, %arg11: memref<8x32xf32, #tpu.memory_space<vmem>>) attributes {dimension_semantics = [#tpu.dimension_semantics<parallel>, #tpu.dimension_semantics<parallel>, #tpu.dimension_semantics<arbitrary>], iteration_bounds = array<i64: 2, 1, 1>, scalar_prefetch = 0 : i64, scratch_operands = 2 : i64, tpu.core_type = #tpu.core_type<tc>, window_params = [{transform_indices = @transform_0, window_bounds = array<i64: 1, 8, 32>}, {transform_indices = @transform_1, window_bounds = array<i64: 1, 8, 32>}, {transform_indices = @transform_2, window_bounds = array<i64: 1, 8, 32>}, {transform_indices = @transform_3, window_bounds = array<i64: 32, 32>}, {pipeline_mode = #tpu.pipeline_mode<synchronous>, transform_indices = @transform_4, window_bounds = array<i64: 1, 32>}, {transform_indices = @transform_5, window_bounds = array<i64: 1, 8, 32>}, {transform_indices = @transform_6, window_bounds = array<i64: 1, 8, 8, 8>}]} {
    %c0_i32 = arith.constant 0 : i32
    %0 = arith.cmpi eq, %arg2, %c0_i32 : i32
    %1 = arith.extui %0 : i1 to i32
    %c0_i32_0 = arith.constant 0 : i32
    %2 = arith.cmpi ne, %1, %c0_i32_0 : i32
    scf.if %2 {
      %cst_149 = arith.constant 0.000000e+00 : f32
      %189 = vector.broadcast %cst_149 : f32 to vector<8x32xf32>
      %c0_150 = arith.constant 0 : index
      %c0_151 = arith.constant 0 : index
      %190 = vector.load %arg11[%c0_150, %c0_151] : memref<8x32xf32, #tpu.memory_space<vmem>>, vector<8x32xf32>
      tpu.vector_store %arg11[%c0_150, %c0_151], %189 {strides = array<i32>} : memref<8x32xf32, #tpu.memory_space<vmem>>, vector<8x32xf32>,
    } else {
    }
    %c0 = arith.constant 0 : index
    %c0_1 = arith.constant 0 : index
    %c0_2 = arith.constant 0 : index
    %3 = vector.load %arg3[%c0, %c0_1, %c0_2] : memref<1x8x32xbf16, #tpu.memory_space<vmem>>, vector<1x8x4xbf16>
    %4 = vector.shape_cast %3 : vector<1x8x4xbf16> to vector<8x4xbf16>
    %c0_3 = arith.constant 0 : index
    %c0_4 = arith.constant 0 : index
    %c0_5 = arith.constant 0 : index
    %5 = vector.load %arg4[%c0_3, %c0_4, %c0_5] : memref<1x8x32xbf16, #tpu.memory_space<vmem>>, vector<1x8x4xbf16>
    %6 = vector.shape_cast %5 : vector<1x8x4xbf16> to vector<8x4xbf16>
    %c0_6 = arith.constant 0 : index
    %c0_7 = arith.constant 0 : index
    %c0_8 = arith.constant 0 : index
    %7 = vector.load %arg5[%c0_6, %c0_7, %c0_8] : memref<1x8x32xbf16, #tpu.memory_space<vmem>>, vector<1x8x4xbf16>
    %8 = vector.shape_cast %7 : vector<1x8x4xbf16> to vector<8x4xbf16>
    %cst = arith.constant dense<0.000000e+00> : vector<8x8xf32>
    %9 = tpu.matmul %4, %6, %cst {dimension_numbers = #tpu.dot_dimension_numbers<[1], [1], [0], [0], [0, 0, 1, 0], [], []>} : vector<8x4xbf16>, vector<8x4xbf16>, vector<8x8xf32> -> vector<8x8xf32>
    %cst_9 = arith.constant dense<0xFF800000> : vector<8xf32>
    %10 = vector.multi_reduction <maximumf>, %9, %cst_9 [1] : vector<8x8xf32> to vector<8xf32>
    %11 = vector.shape_cast %10 : vector<8xf32> to vector<8x1xf32>
    %12 = vector.broadcast %11 : vector<8x1xf32> to vector<8x8xf32>
    %13 = arith.subf %9, %12 : vector<8x8xf32>
    %14 = math.exp %13 : vector<8x8xf32>
    %cst_10 = arith.constant dense<0.000000e+00> : vector<8xf32>
    %15 = vector.multi_reduction <add>, %14, %cst_10 [1] : vector<8x8xf32> to vector<8xf32>
    %16 = vector.shape_cast %15 : vector<8xf32> to vector<8x1xf32>
    %17 = vector.broadcast %16 : vector<8x1xf32> to vector<8x8xf32>
    %18 = arith.divf %14, %17 : vector<8x8xf32>
    %c0_11 = arith.constant 0 : index
    %c0_12 = arith.constant 0 : index
    %c0_13 = arith.constant 0 : index
    %c0_14 = arith.constant 0 : index
    %19 = vector.load %arg9[%c0_11, %c0_12, %c0_13, %c0_14] : memref<1x8x8x8xf32, #tpu.memory_space<vmem>>, vector<1x1x8x8xf32>
    %20 = vector.shape_cast %19 : vector<1x1x8x8xf32> to vector<8x8xf32>
    %21 = vector.shape_cast %18 : vector<8x8xf32> to vector<1x1x8x8xf32>
    tpu.vector_store %arg9[%c0_11, %c0_12, %c0_13, %c0_14], %21 {strides = array<i32>} : memref<1x8x8x8xf32, #tpu.memory_space<vmem>>, vector<1x1x8x8xf32>,
    %22 = arith.truncf %18 : vector<8x8xf32> to vector<8x8xbf16>
    %cst_15 = arith.constant dense<0.000000e+00> : vector<8x4xf32>
    %23 = tpu.matmul %22, %8, %cst_15 {dimension_numbers = #tpu.dot_dimension_numbers<[1], [0], [0], [1], [0, 0, 1, 1], [], []>} : vector<8x8xbf16>, vector<8x4xbf16>, vector<8x4xf32> -> vector<8x4xf32>
    %c0_16 = arith.constant 0 : index
    %c0_17 = arith.constant 0 : index
    %24 = vector.load %arg10[%c0_16, %c0_17] : memref<8x32xf32, #tpu.memory_space<vmem>>, vector<8x4xf32>
    tpu.vector_store %arg10[%c0_16, %c0_17], %23 {strides = array<i32>} : memref<8x32xf32, #tpu.memory_space<vmem>>, vector<8x4xf32>,
    %c0_18 = arith.constant 0 : index
    %c0_19 = arith.constant 0 : index
    %c4 = arith.constant 4 : index
    %25 = vector.load %arg3[%c0_18, %c0_19, %c4] : memref<1x8x32xbf16, #tpu.memory_space<vmem>>, vector<1x8x4xbf16>
    %26 = vector.shape_cast %25 : vector<1x8x4xbf16> to vector<8x4xbf16>
    %c0_20 = arith.constant 0 : index
    %c0_21 = arith.constant 0 : index
    %c4_22 = arith.constant 4 : index
    %27 = vector.load %arg4[%c0_20, %c0_21, %c4_22] : memref<1x8x32xbf16, #tpu.memory_space<vmem>>, vector<1x8x4xbf16>
    %28 = vector.shape_cast %27 : vector<1x8x4xbf16> to vector<8x4xbf16>
    %c0_23 = arith.constant 0 : index
    %c0_24 = arith.constant 0 : index
    %c4_25 = arith.constant 4 : index
    %29 = vector.load %arg5[%c0_23, %c0_24, %c4_25] : memref<1x8x32xbf16, #tpu.memory_space<vmem>>, vector<1x8x4xbf16>
    %30 = vector.shape_cast %29 : vector<1x8x4xbf16> to vector<8x4xbf16>
    %cst_26 = arith.constant dense<0.000000e+00> : vector<8x8xf32>
    %31 = tpu.matmul %26, %28, %cst_26 {dimension_numbers = #tpu.dot_dimension_numbers<[1], [1], [0], [0], [0, 0, 1, 0], [], []>} : vector<8x4xbf16>, vector<8x4xbf16>, vector<8x8xf32> -> vector<8x8xf32>
    %cst_27 = arith.constant dense<0xFF800000> : vector<8xf32>
    %32 = vector.multi_reduction <maximumf>, %31, %cst_27 [1] : vector<8x8xf32> to vector<8xf32>
    %33 = vector.shape_cast %32 : vector<8xf32> to vector<8x1xf32>
    %34 = vector.broadcast %33 : vector<8x1xf32> to vector<8x8xf32>
    %35 = arith.subf %31, %34 : vector<8x8xf32>
    %36 = math.exp %35 : vector<8x8xf32>
    %cst_28 = arith.constant dense<0.000000e+00> : vector<8xf32>
    %37 = vector.multi_reduction <add>, %36, %cst_28 [1] : vector<8x8xf32> to vector<8xf32>
    %38 = vector.shape_cast %37 : vector<8xf32> to vector<8x1xf32>
    %39 = vector.broadcast %38 : vector<8x1xf32> to vector<8x8xf32>
    %40 = arith.divf %36, %39 : vector<8x8xf32>
    %c0_29 = arith.constant 0 : index
    %c1 = arith.constant 1 : index
    %c0_30 = arith.constant 0 : index
    %c0_31 = arith.constant 0 : index
    %41 = vector.load %arg9[%c0_29, %c1, %c0_30, %c0_31] : memref<1x8x8x8xf32, #tpu.memory_space<vmem>>, vector<1x1x8x8xf32>
    %42 = vector.shape_cast %41 : vector<1x1x8x8xf32> to vector<8x8xf32>
    %43 = vector.shape_cast %40 : vector<8x8xf32> to vector<1x1x8x8xf32>
    tpu.vector_store %arg9[%c0_29, %c1, %c0_30, %c0_31], %43 {strides = array<i32>} : memref<1x8x8x8xf32, #tpu.memory_space<vmem>>, vector<1x1x8x8xf32>,
    %44 = arith.truncf %40 : vector<8x8xf32> to vector<8x8xbf16>
    %cst_32 = arith.constant dense<0.000000e+00> : vector<8x4xf32>
    %45 = tpu.matmul %44, %30, %cst_32 {dimension_numbers = #tpu.dot_dimension_numbers<[1], [0], [0], [1], [0, 0, 1, 1], [], []>} : vector<8x8xbf16>, vector<8x4xbf16>, vector<8x4xf32> -> vector<8x4xf32>
    %c0_33 = arith.constant 0 : index
    %c4_34 = arith.constant 4 : index
    %46 = vector.load %arg10[%c0_33, %c4_34] : memref<8x32xf32, #tpu.memory_space<vmem>>, vector<8x4xf32>
    tpu.vector_store %arg10[%c0_33, %c4_34], %45 {strides = array<i32>} : memref<8x32xf32, #tpu.memory_space<vmem>>, vector<8x4xf32>,
    %c0_35 = arith.constant 0 : index
    %c0_36 = arith.constant 0 : index
    %c8 = arith.constant 8 : index
    %47 = vector.load %arg3[%c0_35, %c0_36, %c8] : memref<1x8x32xbf16, #tpu.memory_space<vmem>>, vector<1x8x4xbf16>
    %48 = vector.shape_cast %47 : vector<1x8x4xbf16> to vector<8x4xbf16>
    %c0_37 = arith.constant 0 : index
    %c0_38 = arith.constant 0 : index
    %c8_39 = arith.constant 8 : index
    %49 = vector.load %arg4[%c0_37, %c0_38, %c8_39] : memref<1x8x32xbf16, #tpu.memory_space<vmem>>, vector<1x8x4xbf16>
    %50 = vector.shape_cast %49 : vector<1x8x4xbf16> to vector<8x4xbf16>
    %c0_40 = arith.constant 0 : index
    %c0_41 = arith.constant 0 : index
    %c8_42 = arith.constant 8 : index
    %51 = vector.load %arg5[%c0_40, %c0_41, %c8_42] : memref<1x8x32xbf16, #tpu.memory_space<vmem>>, vector<1x8x4xbf16>
    %52 = vector.shape_cast %51 : vector<1x8x4xbf16> to vector<8x4xbf16>
    %cst_43 = arith.constant dense<0.000000e+00> : vector<8x8xf32>
    %53 = tpu.matmul %48, %50, %cst_43 {dimension_numbers = #tpu.dot_dimension_numbers<[1], [1], [0], [0], [0, 0, 1, 0], [], []>} : vector<8x4xbf16>, vector<8x4xbf16>, vector<8x8xf32> -> vector<8x8xf32>
    %cst_44 = arith.constant dense<0xFF800000> : vector<8xf32>
    %54 = vector.multi_reduction <maximumf>, %53, %cst_44 [1] : vector<8x8xf32> to vector<8xf32>
    %55 = vector.shape_cast %54 : vector<8xf32> to vector<8x1xf32>
    %56 = vector.broadcast %55 : vector<8x1xf32> to vector<8x8xf32>
    %57 = arith.subf %53, %56 : vector<8x8xf32>
    %58 = math.exp %57 : vector<8x8xf32>
    %cst_45 = arith.constant dense<0.000000e+00> : vector<8xf32>
    %59 = vector.multi_reduction <add>, %58, %cst_45 [1] : vector<8x8xf32> to vector<8xf32>
    %60 = vector.shape_cast %59 : vector<8xf32> to vector<8x1xf32>
    %61 = vector.broadcast %60 : vector<8x1xf32> to vector<8x8xf32>
    %62 = arith.divf %58, %61 : vector<8x8xf32>
    %c0_46 = arith.constant 0 : index
    %c2 = arith.constant 2 : index
    %c0_47 = arith.constant 0 : index
    %c0_48 = arith.constant 0 : index
    %63 = vector.load %arg9[%c0_46, %c2, %c0_47, %c0_48] : memref<1x8x8x8xf32, #tpu.memory_space<vmem>>, vector<1x1x8x8xf32>
    %64 = vector.shape_cast %63 : vector<1x1x8x8xf32> to vector<8x8xf32>
    %65 = vector.shape_cast %62 : vector<8x8xf32> to vector<1x1x8x8xf32>
    tpu.vector_store %arg9[%c0_46, %c2, %c0_47, %c0_48], %65 {strides = array<i32>} : memref<1x8x8x8xf32, #tpu.memory_space<vmem>>, vector<1x1x8x8xf32>,
    %66 = arith.truncf %62 : vector<8x8xf32> to vector<8x8xbf16>
    %cst_49 = arith.constant dense<0.000000e+00> : vector<8x4xf32>
    %67 = tpu.matmul %66, %52, %cst_49 {dimension_numbers = #tpu.dot_dimension_numbers<[1], [0], [0], [1], [0, 0, 1, 1], [], []>} : vector<8x8xbf16>, vector<8x4xbf16>, vector<8x4xf32> -> vector<8x4xf32>
    %c0_50 = arith.constant 0 : index
    %c8_51 = arith.constant 8 : index
    %68 = vector.load %arg10[%c0_50, %c8_51] : memref<8x32xf32, #tpu.memory_space<vmem>>, vector<8x4xf32>
    tpu.vector_store %arg10[%c0_50, %c8_51], %67 {strides = array<i32>} : memref<8x32xf32, #tpu.memory_space<vmem>>, vector<8x4xf32>,
    %c0_52 = arith.constant 0 : index
    %c0_53 = arith.constant 0 : index
    %c12 = arith.constant 12 : index
    %69 = vector.load %arg3[%c0_52, %c0_53, %c12] : memref<1x8x32xbf16, #tpu.memory_space<vmem>>, vector<1x8x4xbf16>
    %70 = vector.shape_cast %69 : vector<1x8x4xbf16> to vector<8x4xbf16>
    %c0_54 = arith.constant 0 : index
    %c0_55 = arith.constant 0 : index
    %c12_56 = arith.constant 12 : index
    %71 = vector.load %arg4[%c0_54, %c0_55, %c12_56] : memref<1x8x32xbf16, #tpu.memory_space<vmem>>, vector<1x8x4xbf16>
    %72 = vector.shape_cast %71 : vector<1x8x4xbf16> to vector<8x4xbf16>
    %c0_57 = arith.constant 0 : index
    %c0_58 = arith.constant 0 : index
    %c12_59 = arith.constant 12 : index
    %73 = vector.load %arg5[%c0_57, %c0_58, %c12_59] : memref<1x8x32xbf16, #tpu.memory_space<vmem>>, vector<1x8x4xbf16>
    %74 = vector.shape_cast %73 : vector<1x8x4xbf16> to vector<8x4xbf16>
    %cst_60 = arith.constant dense<0.000000e+00> : vector<8x8xf32>
    %75 = tpu.matmul %70, %72, %cst_60 {dimension_numbers = #tpu.dot_dimension_numbers<[1], [1], [0], [0], [0, 0, 1, 0], [], []>} : vector<8x4xbf16>, vector<8x4xbf16>, vector<8x8xf32> -> vector<8x8xf32>
    %cst_61 = arith.constant dense<0xFF800000> : vector<8xf32>
    %76 = vector.multi_reduction <maximumf>, %75, %cst_61 [1] : vector<8x8xf32> to vector<8xf32>
    %77 = vector.shape_cast %76 : vector<8xf32> to vector<8x1xf32>
    %78 = vector.broadcast %77 : vector<8x1xf32> to vector<8x8xf32>
    %79 = arith.subf %75, %78 : vector<8x8xf32>
    %80 = math.exp %79 : vector<8x8xf32>
    %cst_62 = arith.constant dense<0.000000e+00> : vector<8xf32>
    %81 = vector.multi_reduction <add>, %80, %cst_62 [1] : vector<8x8xf32> to vector<8xf32>
    %82 = vector.shape_cast %81 : vector<8xf32> to vector<8x1xf32>
    %83 = vector.broadcast %82 : vector<8x1xf32> to vector<8x8xf32>
    %84 = arith.divf %80, %83 : vector<8x8xf32>
    %c0_63 = arith.constant 0 : index
    %c3 = arith.constant 3 : index
    %c0_64 = arith.constant 0 : index
    %c0_65 = arith.constant 0 : index
    %85 = vector.load %arg9[%c0_63, %c3, %c0_64, %c0_65] : memref<1x8x8x8xf32, #tpu.memory_space<vmem>>, vector<1x1x8x8xf32>
    %86 = vector.shape_cast %85 : vector<1x1x8x8xf32> to vector<8x8xf32>
    %87 = vector.shape_cast %84 : vector<8x8xf32> to vector<1x1x8x8xf32>
    tpu.vector_store %arg9[%c0_63, %c3, %c0_64, %c0_65], %87 {strides = array<i32>} : memref<1x8x8x8xf32, #tpu.memory_space<vmem>>, vector<1x1x8x8xf32>,
    %88 = arith.truncf %84 : vector<8x8xf32> to vector<8x8xbf16>
    %cst_66 = arith.constant dense<0.000000e+00> : vector<8x4xf32>
    %89 = tpu.matmul %88, %74, %cst_66 {dimension_numbers = #tpu.dot_dimension_numbers<[1], [0], [0], [1], [0, 0, 1, 1], [], []>} : vector<8x8xbf16>, vector<8x4xbf16>, vector<8x4xf32> -> vector<8x4xf32>
    %c0_67 = arith.constant 0 : index
    %c12_68 = arith.constant 12 : index
    %90 = vector.load %arg10[%c0_67, %c12_68] : memref<8x32xf32, #tpu.memory_space<vmem>>, vector<8x4xf32>
    tpu.vector_store %arg10[%c0_67, %c12_68], %89 {strides = array<i32>} : memref<8x32xf32, #tpu.memory_space<vmem>>, vector<8x4xf32>,
    %c0_69 = arith.constant 0 : index
    %c0_70 = arith.constant 0 : index
    %c16 = arith.constant 16 : index
    %91 = vector.load %arg3[%c0_69, %c0_70, %c16] : memref<1x8x32xbf16, #tpu.memory_space<vmem>>, vector<1x8x4xbf16>
    %92 = vector.shape_cast %91 : vector<1x8x4xbf16> to vector<8x4xbf16>
    %c0_71 = arith.constant 0 : index
    %c0_72 = arith.constant 0 : index
    %c16_73 = arith.constant 16 : index
    %93 = vector.load %arg4[%c0_71, %c0_72, %c16_73] : memref<1x8x32xbf16, #tpu.memory_space<vmem>>, vector<1x8x4xbf16>
    %94 = vector.shape_cast %93 : vector<1x8x4xbf16> to vector<8x4xbf16>
    %c0_74 = arith.constant 0 : index
    %c0_75 = arith.constant 0 : index
    %c16_76 = arith.constant 16 : index
    %95 = vector.load %arg5[%c0_74, %c0_75, %c16_76] : memref<1x8x32xbf16, #tpu.memory_space<vmem>>, vector<1x8x4xbf16>
    %96 = vector.shape_cast %95 : vector<1x8x4xbf16> to vector<8x4xbf16>
    %cst_77 = arith.constant dense<0.000000e+00> : vector<8x8xf32>
    %97 = tpu.matmul %92, %94, %cst_77 {dimension_numbers = #tpu.dot_dimension_numbers<[1], [1], [0], [0], [0, 0, 1, 0], [], []>} : vector<8x4xbf16>, vector<8x4xbf16>, vector<8x8xf32> -> vector<8x8xf32>
    %cst_78 = arith.constant dense<0xFF800000> : vector<8xf32>
    %98 = vector.multi_reduction <maximumf>, %97, %cst_78 [1] : vector<8x8xf32> to vector<8xf32>
    %99 = vector.shape_cast %98 : vector<8xf32> to vector<8x1xf32>
    %100 = vector.broadcast %99 : vector<8x1xf32> to vector<8x8xf32>
    %101 = arith.subf %97, %100 : vector<8x8xf32>
    %102 = math.exp %101 : vector<8x8xf32>
    %cst_79 = arith.constant dense<0.000000e+00> : vector<8xf32>
    %103 = vector.multi_reduction <add>, %102, %cst_79 [1] : vector<8x8xf32> to vector<8xf32>
    %104 = vector.shape_cast %103 : vector<8xf32> to vector<8x1xf32>
    %105 = vector.broadcast %104 : vector<8x1xf32> to vector<8x8xf32>
    %106 = arith.divf %102, %105 : vector<8x8xf32>
    %c0_80 = arith.constant 0 : index
    %c4_81 = arith.constant 4 : index
    %c0_82 = arith.constant 0 : index
    %c0_83 = arith.constant 0 : index
    %107 = vector.load %arg9[%c0_80, %c4_81, %c0_82, %c0_83] : memref<1x8x8x8xf32, #tpu.memory_space<vmem>>, vector<1x1x8x8xf32>
    %108 = vector.shape_cast %107 : vector<1x1x8x8xf32> to vector<8x8xf32>
    %109 = vector.shape_cast %106 : vector<8x8xf32> to vector<1x1x8x8xf32>
    tpu.vector_store %arg9[%c0_80, %c4_81, %c0_82, %c0_83], %109 {strides = array<i32>} : memref<1x8x8x8xf32, #tpu.memory_space<vmem>>, vector<1x1x8x8xf32>,
    %110 = arith.truncf %106 : vector<8x8xf32> to vector<8x8xbf16>
    %cst_84 = arith.constant dense<0.000000e+00> : vector<8x4xf32>
    %111 = tpu.matmul %110, %96, %cst_84 {dimension_numbers = #tpu.dot_dimension_numbers<[1], [0], [0], [1], [0, 0, 1, 1], [], []>} : vector<8x8xbf16>, vector<8x4xbf16>, vector<8x4xf32> -> vector<8x4xf32>
    %c0_85 = arith.constant 0 : index
    %c16_86 = arith.constant 16 : index
    %112 = vector.load %arg10[%c0_85, %c16_86] : memref<8x32xf32, #tpu.memory_space<vmem>>, vector<8x4xf32>
    tpu.vector_store %arg10[%c0_85, %c16_86], %111 {strides = array<i32>} : memref<8x32xf32, #tpu.memory_space<vmem>>, vector<8x4xf32>,
    %c0_87 = arith.constant 0 : index
    %c0_88 = arith.constant 0 : index
    %c20 = arith.constant 20 : index
    %113 = vector.load %arg3[%c0_87, %c0_88, %c20] : memref<1x8x32xbf16, #tpu.memory_space<vmem>>, vector<1x8x4xbf16>
    %114 = vector.shape_cast %113 : vector<1x8x4xbf16> to vector<8x4xbf16>
    %c0_89 = arith.constant 0 : index
    %c0_90 = arith.constant 0 : index
    %c20_91 = arith.constant 20 : index
    %115 = vector.load %arg4[%c0_89, %c0_90, %c20_91] : memref<1x8x32xbf16, #tpu.memory_space<vmem>>, vector<1x8x4xbf16>
    %116 = vector.shape_cast %115 : vector<1x8x4xbf16> to vector<8x4xbf16>
    %c0_92 = arith.constant 0 : index
    %c0_93 = arith.constant 0 : index
    %c20_94 = arith.constant 20 : index
    %117 = vector.load %arg5[%c0_92, %c0_93, %c20_94] : memref<1x8x32xbf16, #tpu.memory_space<vmem>>, vector<1x8x4xbf16>
    %118 = vector.shape_cast %117 : vector<1x8x4xbf16> to vector<8x4xbf16>
    %cst_95 = arith.constant dense<0.000000e+00> : vector<8x8xf32>
    %119 = tpu.matmul %114, %116, %cst_95 {dimension_numbers = #tpu.dot_dimension_numbers<[1], [1], [0], [0], [0, 0, 1, 0], [], []>} : vector<8x4xbf16>, vector<8x4xbf16>, vector<8x8xf32> -> vector<8x8xf32>
    %cst_96 = arith.constant dense<0xFF800000> : vector<8xf32>
    %120 = vector.multi_reduction <maximumf>, %119, %cst_96 [1] : vector<8x8xf32> to vector<8xf32>
    %121 = vector.shape_cast %120 : vector<8xf32> to vector<8x1xf32>
    %122 = vector.broadcast %121 : vector<8x1xf32> to vector<8x8xf32>
    %123 = arith.subf %119, %122 : vector<8x8xf32>
    %124 = math.exp %123 : vector<8x8xf32>
    %cst_97 = arith.constant dense<0.000000e+00> : vector<8xf32>
    %125 = vector.multi_reduction <add>, %124, %cst_97 [1] : vector<8x8xf32> to vector<8xf32>
    %126 = vector.shape_cast %125 : vector<8xf32> to vector<8x1xf32>
    %127 = vector.broadcast %126 : vector<8x1xf32> to vector<8x8xf32>
    %128 = arith.divf %124, %127 : vector<8x8xf32>
    %c0_98 = arith.constant 0 : index
    %c5 = arith.constant 5 : index
    %c0_99 = arith.constant 0 : index
    %c0_100 = arith.constant 0 : index
    %129 = vector.load %arg9[%c0_98, %c5, %c0_99, %c0_100] : memref<1x8x8x8xf32, #tpu.memory_space<vmem>>, vector<1x1x8x8xf32>
    %130 = vector.shape_cast %129 : vector<1x1x8x8xf32> to vector<8x8xf32>
    %131 = vector.shape_cast %128 : vector<8x8xf32> to vector<1x1x8x8xf32>
    tpu.vector_store %arg9[%c0_98, %c5, %c0_99, %c0_100], %131 {strides = array<i32>} : memref<1x8x8x8xf32, #tpu.memory_space<vmem>>, vector<1x1x8x8xf32>,
    %132 = arith.truncf %128 : vector<8x8xf32> to vector<8x8xbf16>
    %cst_101 = arith.constant dense<0.000000e+00> : vector<8x4xf32>
    %133 = tpu.matmul %132, %118, %cst_101 {dimension_numbers = #tpu.dot_dimension_numbers<[1], [0], [0], [1], [0, 0, 1, 1], [], []>} : vector<8x8xbf16>, vector<8x4xbf16>, vector<8x4xf32> -> vector<8x4xf32>
    %c0_102 = arith.constant 0 : index
    %c20_103 = arith.constant 20 : index
    %134 = vector.load %arg10[%c0_102, %c20_103] : memref<8x32xf32, #tpu.memory_space<vmem>>, vector<8x4xf32>
    tpu.vector_store %arg10[%c0_102, %c20_103], %133 {strides = array<i32>} : memref<8x32xf32, #tpu.memory_space<vmem>>, vector<8x4xf32>,
    %c0_104 = arith.constant 0 : index
    %c0_105 = arith.constant 0 : index
    %c24 = arith.constant 24 : index
    %135 = vector.load %arg3[%c0_104, %c0_105, %c24] : memref<1x8x32xbf16, #tpu.memory_space<vmem>>, vector<1x8x4xbf16>
    %136 = vector.shape_cast %135 : vector<1x8x4xbf16> to vector<8x4xbf16>
    %c0_106 = arith.constant 0 : index
    %c0_107 = arith.constant 0 : index
    %c24_108 = arith.constant 24 : index
    %137 = vector.load %arg4[%c0_106, %c0_107, %c24_108] : memref<1x8x32xbf16, #tpu.memory_space<vmem>>, vector<1x8x4xbf16>
    %138 = vector.shape_cast %137 : vector<1x8x4xbf16> to vector<8x4xbf16>
    %c0_109 = arith.constant 0 : index
    %c0_110 = arith.constant 0 : index
    %c24_111 = arith.constant 24 : index
    %139 = vector.load %arg5[%c0_109, %c0_110, %c24_111] : memref<1x8x32xbf16, #tpu.memory_space<vmem>>, vector<1x8x4xbf16>
    %140 = vector.shape_cast %139 : vector<1x8x4xbf16> to vector<8x4xbf16>
    %cst_112 = arith.constant dense<0.000000e+00> : vector<8x8xf32>
    %141 = tpu.matmul %136, %138, %cst_112 {dimension_numbers = #tpu.dot_dimension_numbers<[1], [1], [0], [0], [0, 0, 1, 0], [], []>} : vector<8x4xbf16>, vector<8x4xbf16>, vector<8x8xf32> -> vector<8x8xf32>
    %cst_113 = arith.constant dense<0xFF800000> : vector<8xf32>
    %142 = vector.multi_reduction <maximumf>, %141, %cst_113 [1] : vector<8x8xf32> to vector<8xf32>
    %143 = vector.shape_cast %142 : vector<8xf32> to vector<8x1xf32>
    %144 = vector.broadcast %143 : vector<8x1xf32> to vector<8x8xf32>
    %145 = arith.subf %141, %144 : vector<8x8xf32>
    %146 = math.exp %145 : vector<8x8xf32>
    %cst_114 = arith.constant dense<0.000000e+00> : vector<8xf32>
    %147 = vector.multi_reduction <add>, %146, %cst_114 [1] : vector<8x8xf32> to vector<8xf32>
    %148 = vector.shape_cast %147 : vector<8xf32> to vector<8x1xf32>
    %149 = vector.broadcast %148 : vector<8x1xf32> to vector<8x8xf32>
    %150 = arith.divf %146, %149 : vector<8x8xf32>
    %c0_115 = arith.constant 0 : index
    %c6 = arith.constant 6 : index
    %c0_116 = arith.constant 0 : index
    %c0_117 = arith.constant 0 : index
    %151 = vector.load %arg9[%c0_115, %c6, %c0_116, %c0_117] : memref<1x8x8x8xf32, #tpu.memory_space<vmem>>, vector<1x1x8x8xf32>
    %152 = vector.shape_cast %151 : vector<1x1x8x8xf32> to vector<8x8xf32>
    %153 = vector.shape_cast %150 : vector<8x8xf32> to vector<1x1x8x8xf32>
    tpu.vector_store %arg9[%c0_115, %c6, %c0_116, %c0_117], %153 {strides = array<i32>} : memref<1x8x8x8xf32, #tpu.memory_space<vmem>>, vector<1x1x8x8xf32>,
    %154 = arith.truncf %150 : vector<8x8xf32> to vector<8x8xbf16>
    %cst_118 = arith.constant dense<0.000000e+00> : vector<8x4xf32>
    %155 = tpu.matmul %154, %140, %cst_118 {dimension_numbers = #tpu.dot_dimension_numbers<[1], [0], [0], [1], [0, 0, 1, 1], [], []>} : vector<8x8xbf16>, vector<8x4xbf16>, vector<8x4xf32> -> vector<8x4xf32>
    %c0_119 = arith.constant 0 : index
    %c24_120 = arith.constant 24 : index
    %156 = vector.load %arg10[%c0_119, %c24_120] : memref<8x32xf32, #tpu.memory_space<vmem>>, vector<8x4xf32>
    tpu.vector_store %arg10[%c0_119, %c24_120], %155 {strides = array<i32>} : memref<8x32xf32, #tpu.memory_space<vmem>>, vector<8x4xf32>,
    %c0_121 = arith.constant 0 : index
    %c0_122 = arith.constant 0 : index
    %c28 = arith.constant 28 : index
    %157 = vector.load %arg3[%c0_121, %c0_122, %c28] : memref<1x8x32xbf16, #tpu.memory_space<vmem>>, vector<1x8x4xbf16>
    %158 = vector.shape_cast %157 : vector<1x8x4xbf16> to vector<8x4xbf16>
    %c0_123 = arith.constant 0 : index
    %c0_124 = arith.constant 0 : index
    %c28_125 = arith.constant 28 : index
    %159 = vector.load %arg4[%c0_123, %c0_124, %c28_125] : memref<1x8x32xbf16, #tpu.memory_space<vmem>>, vector<1x8x4xbf16>
    %160 = vector.shape_cast %159 : vector<1x8x4xbf16> to vector<8x4xbf16>
    %c0_126 = arith.constant 0 : index
    %c0_127 = arith.constant 0 : index
    %c28_128 = arith.constant 28 : index
    %161 = vector.load %arg5[%c0_126, %c0_127, %c28_128] : memref<1x8x32xbf16, #tpu.memory_space<vmem>>, vector<1x8x4xbf16>
    %162 = vector.shape_cast %161 : vector<1x8x4xbf16> to vector<8x4xbf16>
    %cst_129 = arith.constant dense<0.000000e+00> : vector<8x8xf32>
    %163 = tpu.matmul %158, %160, %cst_129 {dimension_numbers = #tpu.dot_dimension_numbers<[1], [1], [0], [0], [0, 0, 1, 0], [], []>} : vector<8x4xbf16>, vector<8x4xbf16>, vector<8x8xf32> -> vector<8x8xf32>
    %cst_130 = arith.constant dense<0xFF800000> : vector<8xf32>
    %164 = vector.multi_reduction <maximumf>, %163, %cst_130 [1] : vector<8x8xf32> to vector<8xf32>
    %165 = vector.shape_cast %164 : vector<8xf32> to vector<8x1xf32>
    %166 = vector.broadcast %165 : vector<8x1xf32> to vector<8x8xf32>
    %167 = arith.subf %163, %166 : vector<8x8xf32>
    %168 = math.exp %167 : vector<8x8xf32>
    %cst_131 = arith.constant dense<0.000000e+00> : vector<8xf32>
    %169 = vector.multi_reduction <add>, %168, %cst_131 [1] : vector<8x8xf32> to vector<8xf32>
    %170 = vector.shape_cast %169 : vector<8xf32> to vector<8x1xf32>
    %171 = vector.broadcast %170 : vector<8x1xf32> to vector<8x8xf32>
    %172 = arith.divf %168, %171 : vector<8x8xf32>
    %c0_132 = arith.constant 0 : index
    %c7 = arith.constant 7 : index
    %c0_133 = arith.constant 0 : index
    %c0_134 = arith.constant 0 : index
    %173 = vector.load %arg9[%c0_132, %c7, %c0_133, %c0_134] : memref<1x8x8x8xf32, #tpu.memory_space<vmem>>, vector<1x1x8x8xf32>
    %174 = vector.shape_cast %173 : vector<1x1x8x8xf32> to vector<8x8xf32>
    %175 = vector.shape_cast %172 : vector<8x8xf32> to vector<1x1x8x8xf32>
    tpu.vector_store %arg9[%c0_132, %c7, %c0_133, %c0_134], %175 {strides = array<i32>} : memref<1x8x8x8xf32, #tpu.memory_space<vmem>>, vector<1x1x8x8xf32>,
    %176 = arith.truncf %172 : vector<8x8xf32> to vector<8x8xbf16>
    %cst_135 = arith.constant dense<0.000000e+00> : vector<8x4xf32>
    %177 = tpu.matmul %176, %162, %cst_135 {dimension_numbers = #tpu.dot_dimension_numbers<[1], [0], [0], [1], [0, 0, 1, 1], [], []>} : vector<8x8xbf16>, vector<8x4xbf16>, vector<8x4xf32> -> vector<8x4xf32>
    %c0_136 = arith.constant 0 : index
    %c28_137 = arith.constant 28 : index
    %178 = vector.load %arg10[%c0_136, %c28_137] : memref<8x32xf32, #tpu.memory_space<vmem>>, vector<8x4xf32>
    tpu.vector_store %arg10[%c0_136, %c28_137], %177 {strides = array<i32>} : memref<8x32xf32, #tpu.memory_space<vmem>>, vector<8x4xf32>,
    %c0_138 = arith.constant 0 : index
    %c0_139 = arith.constant 0 : index
    %179 = vector.load %arg11[%c0_138, %c0_139] : memref<8x32xf32, #tpu.memory_space<vmem>>, vector<8x32xf32>
    %c0_140 = arith.constant 0 : index
    %c0_141 = arith.constant 0 : index
    %180 = vector.load %arg10[%c0_140, %c0_141] : memref<8x32xf32, #tpu.memory_space<vmem>>, vector<8x32xf32>
    %181 = arith.truncf %180 : vector<8x32xf32> to vector<8x32xbf16>
    %c0_142 = arith.constant 0 : index
    %c0_143 = arith.constant 0 : index
    %182 = vector.load %arg6[%c0_142, %c0_143] : memref<32x32xbf16, #tpu.memory_space<vmem>>, vector<32x32xbf16>
    %cst_144 = arith.constant dense<0.000000e+00> : vector<8x32xf32>
    %183 = tpu.matmul %181, %182, %cst_144 {dimension_numbers = #tpu.dot_dimension_numbers<[1], [0], [0], [1], [0, 0, 1, 1], [], []>} : vector<8x32xbf16>, vector<32x32xbf16>, vector<8x32xf32> -> vector<8x32xf32>
    %184 = arith.addf %179, %183 : vector<8x32xf32>
    %c0_145 = arith.constant 0 : index
    %c0_146 = arith.constant 0 : index
    %185 = vector.load %arg11[%c0_145, %c0_146] : memref<8x32xf32, #tpu.memory_space<vmem>>, vector<8x32xf32>
    tpu.vector_store %arg11[%c0_145, %c0_146], %184 {strides = array<i32>} : memref<8x32xf32, #tpu.memory_space<vmem>>, vector<8x32xf32>,
    %c0_i32_147 = arith.constant 0 : i32
    %186 = arith.cmpi eq, %arg2, %c0_i32_147 : i32
    %187 = arith.extui %186 : i1 to i32
    %c0_i32_148 = arith.constant 0 : i32
    %188 = arith.cmpi ne, %187, %c0_i32_148 : i32
    scf.if %188 {
      %c0_149 = arith.constant 0 : index
      %c0_150 = arith.constant 0 : index
      %189 = vector.load %arg11[%c0_149, %c0_150] : memref<8x32xf32, #tpu.memory_space<vmem>>, vector<8x32xf32>
      %c0_151 = arith.constant 0 : index
      %c0_152 = arith.constant 0 : index
      %190 = vector.load %arg7[%c0_151, %c0_152] : memref<1x32xf32, #tpu.memory_space<vmem>>, vector<1x32xf32>
      %191 = vector.broadcast %190 : vector<1x32xf32> to vector<8x32xf32>
      %192 = arith.addf %189, %191 : vector<8x32xf32>
      %c0_153 = arith.constant 0 : index
      %c0_154 = arith.constant 0 : index
      %c0_155 = arith.constant 0 : index
      %193 = vector.load %arg8[%c0_153, %c0_154, %c0_155] : memref<1x8x32xf32, #tpu.memory_space<vmem>>, vector<1x8x32xf32>
      %194 = vector.shape_cast %193 : vector<1x8x32xf32> to vector<8x32xf32>
      %195 = vector.shape_cast %192 : vector<8x32xf32> to vector<1x8x32xf32>
      tpu.vector_store %arg8[%c0_153, %c0_154, %c0_155], %195 {strides = array<i32>} : memref<1x8x32xf32, #tpu.memory_space<vmem>>, vector<1x8x32xf32>,
    } else {
    }
    return
  }
  func.func @transform_0(%arg0: i32, %arg1: i32, %arg2: i32) -> (i32, i32, i32) {
    %c0_i32 = arith.constant 0 : i32
    return %arg0, %arg1, %arg2 : i32, i32, i32
  }
  func.func @transform_1(%arg0: i32, %arg1: i32, %arg2: i32) -> (i32, i32, i32) {
    %c0_i32 = arith.constant 0 : i32
    %c0_i32_0 = arith.constant 0 : i32
    return %arg0, %c0_i32, %arg2 : i32, i32, i32
  }
  func.func @transform_2(%arg0: i32, %arg1: i32, %arg2: i32) -> (i32, i32, i32) {
    %c0_i32 = arith.constant 0 : i32
    %c0_i32_0 = arith.constant 0 : i32
    return %arg0, %c0_i32, %arg2 : i32, i32, i32
  }
  func.func @transform_3(%arg0: i32, %arg1: i32, %arg2: i32) -> (i32, i32) {
    %c0_i32 = arith.constant 0 : i32
    %c0_i32_0 = arith.constant 0 : i32
    return %arg2, %c0_i32 : i32, i32
  }
  func.func @transform_4(%arg0: i32, %arg1: i32, %arg2: i32) -> (i32, i32) {
    %c0_i32 = arith.constant 0 : i32
    %c0_i32_0 = arith.constant 0 : i32
    %c0_i32_1 = arith.constant 0 : i32
    return %c0_i32, %c0_i32_0 : i32, i32
  }
  func.func @transform_5(%arg0: i32, %arg1: i32, %arg2: i32) -> (i32, i32, i32) {
    %c0_i32 = arith.constant 0 : i32
    %c0_i32_0 = arith.constant 0 : i32
    return %arg0, %arg1, %c0_i32 : i32, i32, i32
  }
  func.func @transform_6(%arg0: i32, %arg1: i32, %arg2: i32) -> (i32, i32, i32, i32) {
    %c0_i32 = arith.constant 0 : i32
    %c0_i32_0 = arith.constant 0 : i32
    return %arg0, %arg2, %arg1, %c0_i32 : i32, i32, i32, i32
  }
}

</mosaic_0001>

<llo_original>
// kernel: multi_head_cross_attention.2
$region0: #{multi_head_cross_attention.2}
  #allocation0 [shape = 'u32[]', space=smem, size = 0x4, offset = 0x4, fixed_abs, tag = 'smem constant byte address 0x4 - core index']
  #allocation1 [shape = 'u32[72,128]{1,0:T(1,128)}', space=vmem, size = 0x9000, scoped, tag = 'internal scratch']
  #allocation2 [shape = 'f32[16,32]{1,0:T(8,128)}', space=vmem, size = 0x2000, scoped, tag = 'scratch operand']
  %s0 = inlined_call_operand.vmem [shape: f32[3,16,32], index: 0, kind: input, shape index: {}]
  %s1 = inlined_call_operand.vmem [shape: bf16[3,32,32], index: 1, kind: input, shape index: {}]
  %s2 = inlined_call_operand.vmem [shape: f32[3,1,32], index: 2, kind: input, shape index: {}]
  %s3 = inlined_call_operand.vmem [shape: bf16[3,16,32], index: 3, kind: output, shape index: {}]
  %s4 = sld [smem:[#allocation0]]
  $region53: #{multi_head_cross_attention.2} parent=0
    _
  %s6 = ssub.s32 1, %s4
  %s7 = scalar_select 0, %s6, %s4
  loop: start=0, step=1, limit=5
  $region2: #{multi_head_cross_attention.2} parent=0 // loop_pre_header
    _
  $region3: #{multi_head_cross_attention.2} parent=0 // loop_header
    %s9 = sphi 0, %s13
    %p10 = scmp.ge.s32.totalorder %s9, 5
    %s16 = sphi 0, %s42
    %s17 = sphi 0, %s38
    %s18 = sphi 0, %s34
    %s19 = sphi 0, %s30
    %s20 = sphi 0, %s16
    %s21 = sphi 0, %s17
    %s22 = sphi 0, %s18
    %s23 = sphi 0, %s19
    %s24 = sphi 0, %s20
    %s25 = sphi 0, %s21
    %s26 = sphi 0, %s22
    %s27 = sphi 0, %s23
    %s49 = sphi 0, %s51
    %s52 = sphi 0, %s49
    %s53 = sphi 0, %s52
    %s69 = sphi 0, %s53
    %s79 = sphi 0, %s81
    %s82 = sphi 0, %s79
    %s83 = sphi 0, %s82
    %s99 = sphi 0, %s83
    %s107 = sphi 0, %s109
    %s110 = sphi 0, %s107
    %s111 = sphi 0, %s110
    %s127 = sphi 0, %s111
    %s137 = sphi 0, %s139
    %s140 = sphi 0, %s137
    %s141 = sphi 0, %s140
    %s157 = sphi 0, %s141
  $region4: #{multi_head_cross_attention.2} parent=0 // loop_header_branch
    %12 = sbr.rel (%p10) target = $region8
  $region5: #{multi_head_cross_attention.2} parent=0 // loop_body
    %s14 = ssub.s32 %s9, 1
    %s15 = ssub.s32 %s9, 2
    %s28 = sadd.s32 1, %s19
    %p29 = scmp.ge.s32.totalorder %s28, 1
    %s30 = scalar_select %p29, 0, %s28
    %s31 = sadd.s32 1, %s18
    %s32 = scalar_select %p29, %s31, %s18
    %p33 = scmp.ge.s32.totalorder %s32, 1
    %s34 = scalar_select %p33, 0, %s32
    %s35 = sadd.s32 1, %s17
    %s36 = scalar_select %p33, %s35, %s17
    %p37 = scmp.ge.s32.totalorder %s36, 1
    %s38 = scalar_select %p37, 0, %s36
    %s39 = sadd.s32 1, %s16
    %s40 = scalar_select %p37, %s39, %s16
    %p41 = scmp.ge.s32.totalorder %s40, 3
    %s42 = scalar_select %p41, 0, %s40
    %s43 = ssub.s32 %s16, %s42
    %s44 = ssub.s32 %s17, %s38
    %s45 = sor.u32 %s43, %s44
    %s46 = ssub.s32 %s19, %s30
    %s47 = sor.u32 %s45, %s46
    %p48 = scmp.eq.s32.totalorder %s47, 0
    %s50 = sadd.s32 %s49, 1
    %s51 = scalar_select %p48, %s49, %s50
    %p54 = pneg %p48
    %p55 = scmp.eq.s32.totalorder %s9, 2
    %p56 = por %p54, %p55
    %p57 = scmp.ne.s32.totalorder %s49, %s52
    %p58 = scmp.eq.s32.totalorder %s9, 0
    %p59 = por %p57, %p58
    %p60 = scmp.ne.s32.totalorder %s49, %s52
    %p61 = scmp.eq.s32.totalorder %s14, 2
    %p62 = por %p60, %p61
    %p63 = scmp.ne.s32.totalorder %s52, %s53
    %p64 = scmp.eq.s32.totalorder %s14, 0
    %p65 = por %p63, %p64
    %p66 = scmp.ne.s32.totalorder %s52, %s53
    %p67 = scmp.eq.s32.totalorder %s15, 2
    %p68 = por %p66, %p67
    %p70 = scmp.ne.s32.totalorder %s53, %s69
    %p71 = scmp.eq.s32.totalorder %s15, 0
    %p72 = por %p70, %p71
    %s73 = ssub.s32 %s16, %s42
    %s74 = ssub.s32 %s19, %s30
    %s75 = sor.u32 %s73, %s74
    %s76 = ssub.s32 %s18, %s34
    %s77 = sor.u32 %s75, %s76
    %p78 = scmp.eq.s32.totalorder %s77, 0
    %s80 = sadd.s32 %s79, 1
    %s81 = scalar_select %p78, %s79, %s80
    %p84 = pneg %p78
    %p85 = scmp.eq.s32.totalorder %s9, 2
    %p86 = por %p84, %p85
    %p87 = scmp.ne.s32.totalorder %s79, %s82
    %p88 = scmp.eq.s32.totalorder %s9, 0
    %p89 = por %p87, %p88
    %p90 = scmp.ne.s32.totalorder %s79, %s82
    %p91 = scmp.eq.s32.totalorder %s14, 2
    %p92 = por %p90, %p91
    %p93 = scmp.ne.s32.totalorder %s82, %s83
    %p94 = scmp.eq.s32.totalorder %s14, 0
    %p95 = por %p93, %p94
    %p96 = scmp.ne.s32.totalorder %s82, %s83
    %p97 = scmp.eq.s32.totalorder %s15, 2
    %p98 = por %p96, %p97
    %p100 = scmp.ne.s32.totalorder %s83, %s99
    %p101 = scmp.eq.s32.totalorder %s15, 0
    %p102 = por %p100, %p101
    %s103 = ssub.s32 %s16, %s42
    %s104 = ssub.s32 %s18, %s34
    %s105 = sor.u32 %s103, %s104
    %p106 = scmp.eq.s32.totalorder %s105, 0
    %s108 = sadd.s32 %s107, 1
    %s109 = scalar_select %p106, %s107, %s108
    %p112 = pneg %p106
    %p113 = scmp.eq.s32.totalorder %s9, 2
    %p114 = por %p112, %p113
    %p115 = scmp.ne.s32.totalorder %s107, %s110
    %p116 = scmp.eq.s32.totalorder %s9, 0
    %p117 = por %p115, %p116
    %p118 = scmp.ne.s32.totalorder %s107, %s110
    %p119 = scmp.eq.s32.totalorder %s14, 2
    %p120 = por %p118, %p119
    %p121 = scmp.ne.s32.totalorder %s110, %s111
    %p122 = scmp.eq.s32.totalorder %s14, 0
    %p123 = por %p121, %p122
    %p124 = scmp.ne.s32.totalorder %s110, %s111
    %p125 = scmp.eq.s32.totalorder %s15, 2
    %p126 = por %p124, %p125
    %p128 = scmp.ne.s32.totalorder %s111, %s127
    %p129 = scmp.eq.s32.totalorder %s15, 0
    %p130 = por %p128, %p129
    %s131 = ssub.s32 %s16, %s42
    %s132 = ssub.s32 %s17, %s38
    %s133 = sor.u32 %s131, %s132
    %s134 = ssub.s32 %s18, %s34
    %s135 = sor.u32 %s133, %s134
    %p136 = scmp.eq.s32.totalorder %s135, 0
    %s138 = sadd.s32 %s137, 1
    %s139 = scalar_select %p136, %s137, %s138
    %p142 = pneg %p136
    %p143 = scmp.eq.s32.totalorder %s9, 2
    %p144 = por %p142, %p143
    %p145 = scmp.ne.s32.totalorder %s137, %s140
    %p146 = scmp.eq.s32.totalorder %s9, 0
    %p147 = por %p145, %p146
    %p148 = scmp.ne.s32.totalorder %s137, %s140
    %p149 = scmp.eq.s32.totalorder %s14, 2
    %p150 = por %p148, %p149
    %p151 = scmp.ne.s32.totalorder %s140, %s141
    %p152 = scmp.eq.s32.totalorder %s14, 0
    %p153 = por %p151, %p152
    %p154 = scmp.ne.s32.totalorder %s140, %s141
    %p155 = scmp.eq.s32.totalorder %s15, 2
    %p156 = por %p154, %p155
    %p158 = scmp.ne.s32.totalorder %s141, %s157
    %p159 = scmp.eq.s32.totalorder %s15, 0
    %p160 = por %p158, %p159
    %p161 = scmp.le.s32.totalorder 1, %s9
    %p162 = scmp.lt.s32.totalorder %s9, 4
    %p163 = pnand %p161, %p162
    %p164 = pneg %p163
    // Predicated region
    $region9: #{multi_head_cross_attention.2} parent=5 // pred_check
      _
    $region10: #{multi_head_cross_attention.2} parent=5 // pred_check_branch
      %166 = sbr.rel (%p163) target = $region12
    $region11: #{multi_head_cross_attention.2} parent=5 // pred_region
      %s167 = ssub.s32 %s9, 1
    $region12: #{multi_head_cross_attention.2} parent=5 // pred_fallthru
      _
    %p168 = scmp.lt.s32.totalorder %s9, 3
    // Predicated region
    $region13: #{multi_head_cross_attention.2} parent=5 // pred_check
      %p169 = pneg %p168
    $region14: #{multi_head_cross_attention.2} parent=5 // pred_check_branch
      %171 = sbr.rel (%p169) target = $region16
    $region15: #{multi_head_cross_attention.2} parent=5 // pred_region
      // Predicated region
      $region17: #{multi_head_cross_attention.2} parent=15 // pred_check
        %p172 = pneg %p59
      $region18: #{multi_head_cross_attention.2} parent=15 // pred_check_branch
        %174 = sbr.rel (%p172) target = $region20
      $region19: #{multi_head_cross_attention.2} parent=15 // pred_region
        %s175 = smul.u32 2, %s17
        %p176 = scmp.lt.s32.totalorder %s16, 2
        %s177 = scalar_select %p176, %s16, 2
        %p178 = scmp.lt.s32.totalorder %s175, 1
        %s179 = scalar_select %p178, %s175, 1
        %p180 = scmp.lt.s32.totalorder %s19, 0
        %s181 = scalar_select %p180, %s19, 0
        %s182 = sadd.s32 %s181, %s179
        %s183 = smul.addr %s177, 2
        %s184 = sadd.s32 %s182, %s183
        %s185 = smul.addr %s184, 8
        %s186 = scalar_lea.vmem %s0, %s185
        %s187 = smul.u32 2, %s17
      $region20: #{multi_head_cross_attention.2} parent=15 // pred_fallthru
        _
      // Predicated region
      $region21: #{multi_head_cross_attention.2} parent=15 // pred_check
        %p188 = pneg %p89
      $region22: #{multi_head_cross_attention.2} parent=15 // pred_check_branch
        %190 = sbr.rel (%p188) target = $region24
      $region23: #{multi_head_cross_attention.2} parent=15 // pred_region
        %s191 = smul.u32 4, %s19
        %p192 = scmp.lt.s32.totalorder %s16, 2
        %s193 = scalar_select %p192, %s16, 2
        %p194 = scmp.lt.s32.totalorder %s191, 3
        %s195 = scalar_select %p194, %s191, 3
        %p196 = scmp.lt.s32.totalorder %s18, 0
        %s197 = scalar_select %p196, %s18, 0
        %s198 = sadd.s32 %s197, %s195
        %s199 = smul.addr %s193, 4
        %s200 = sadd.s32 %s198, %s199
        %s201 = smul.addr %s200, 4
        %s202 = scalar_lea.vmem %s1, %s201
        %s203 = smul.u32 4, %s19
      $region24: #{multi_head_cross_attention.2} parent=15 // pred_fallthru
        _
      // Predicated region
      $region25: #{multi_head_cross_attention.2} parent=15 // pred_check
        %p204 = pneg %p117
      $region26: #{multi_head_cross_attention.2} parent=15 // pred_check_branch
        %206 = sbr.rel (%p204) target = $region28
      $region27: #{multi_head_cross_attention.2} parent=15 // pred_region
        %p207 = scmp.lt.s32.totalorder %s16, 2
        %s208 = scalar_select %p207, %s16, 2
        %p209 = scmp.lt.s32.totalorder %s18, 0
        %s210 = scalar_select %p209, %s18, 0
        %s211 = sadd.s32 %s210, %s208
        %s212 = scalar_lea.vmem %s2, %s211
      $region28: #{multi_head_cross_attention.2} parent=15 // pred_fallthru
        _
    $region16: #{multi_head_cross_attention.2} parent=5 // pred_fallthru
      _
    %p213 = scmp.le.s32.totalorder 1, %s9
    %p214 = scmp.lt.s32.totalorder %s9, 4
    %p215 = pnand %p213, %p214
    %p216 = pneg %p215
    // Predicated region
    $region29: #{multi_head_cross_attention.2} parent=5 // pred_check
      _
    $region30: #{multi_head_cross_attention.2} parent=5 // pred_check_branch
      %218 = sbr.rel (%p215) target = $region32
    $region31: #{multi_head_cross_attention.2} parent=5 // pred_region
      %s219 = ssub.s32 %s9, 1
      %s220 = smul.u32 2, %s21
      %p221 = scmp.lt.s32.totalorder %s20, 2
      %s222 = scalar_select %p221, %s20, 2
      %p223 = scmp.lt.s32.totalorder %s220, 1
      %s224 = scalar_select %p223, %s220, 1
      %p225 = scmp.lt.s32.totalorder %s23, 0
      %s226 = scalar_select %p225, %s23, 0
      %s227 = sadd.s32 %s226, %s224
      %s228 = smul.addr %s222, 2
      %s229 = sadd.s32 %s227, %s228
      %s230 = smul.addr %s229, 8
      %s231 = scalar_lea.vmem %s0, %s230
      %p232 = pneg %p65
      %p233 = pneg %p62
      %s234 = smul.u32 4, %s23
      %p235 = scmp.lt.s32.totalorder %s20, 2
      %s236 = scalar_select %p235, %s20, 2
      %p237 = scmp.lt.s32.totalorder %s234, 3
      %s238 = scalar_select %p237, %s234, 3
      %p239 = scmp.lt.s32.totalorder %s22, 0
      %s240 = scalar_select %p239, %s22, 0
      %s241 = sadd.s32 %s240, %s238
      %s242 = smul.addr %s236, 4
      %s243 = sadd.s32 %s241, %s242
      %s244 = smul.addr %s243, 4
      %s245 = scalar_lea.vmem %s1, %s244
      %p246 = pneg %p95
      %p247 = pneg %p92
      %p248 = scmp.lt.s32.totalorder %s20, 2
      %s249 = scalar_select %p248, %s20, 2
      %p250 = scmp.lt.s32.totalorder %s22, 0
      %s251 = scalar_select %p250, %s22, 0
      %s252 = sadd.s32 %s251, %s249
      %s253 = scalar_lea.vmem %s2, %s252
      %p254 = pneg %p123
      %p255 = pneg %p120
      %p256 = pneg %p153
      %p257 = pneg %p150
      %s258 = smul.u32 2, %s21
      %p259 = scmp.lt.s32.totalorder %s20, 2
      %s260 = scalar_select %p259, %s20, 2
      %p261 = scmp.lt.s32.totalorder %s258, 1
      %s262 = scalar_select %p261, %s258, 1
      %p263 = scmp.lt.s32.totalorder %s22, 0
      %s264 = scalar_select %p263, %s22, 0
      %s265 = sadd.s32 %s264, %s262
      %s266 = smul.addr %s260, 2
      %s267 = sadd.s32 %s265, %s266
      %s268 = smul.addr %s267, 4
      %s269 = scalar_lea.vmem %s3, %s268
      %s270 = smul.u32 2, %s21
      %p271 = scmp.lt.s32.totalorder %s20, 2
      %s272 = scalar_select %p271, %s20, 2
      %p273 = scmp.lt.s32.totalorder %s270, 1
      %s274 = scalar_select %p273, %s270, 1
      %p275 = scmp.lt.s32.totalorder %s23, 0
      %s276 = scalar_select %p275, %s23, 0
      %s277 = sadd.s32 %s276, %s274
      %s278 = smul.addr %s272, 2
      %s279 = sadd.s32 %s277, %s278
      %s280 = smul.addr %s279, 8
      %s281 = scalar_lea.vmem %s0, %s280
      %s282 = smul.u32 2, %s21
      %s283 = smul.u32 4, %s23
      %p284 = scmp.lt.s32.totalorder %s20, 2
      %s285 = scalar_select %p284, %s20, 2
      %p286 = scmp.lt.s32.totalorder %s283, 3
      %s287 = scalar_select %p286, %s283, 3
      %p288 = scmp.lt.s32.totalorder %s22, 0
      %s289 = scalar_select %p288, %s22, 0
      %s290 = sadd.s32 %s289, %s287
      %s291 = smul.addr %s285, 4
      %s292 = sadd.s32 %s290, %s291
      %s293 = smul.addr %s292, 4
      %s294 = scalar_lea.vmem %s1, %s293
      %s295 = smul.u32 4, %s23
      %p296 = scmp.lt.s32.totalorder %s20, 2
      %s297 = scalar_select %p296, %s20, 2
      %p298 = scmp.lt.s32.totalorder %s22, 0
      %s299 = scalar_select %p298, %s22, 0
      %s300 = sadd.s32 %s299, %s297
      %s301 = scalar_lea.vmem %s2, %s300
      %s302 = smul.u32 2, %s21
      %p303 = scmp.lt.s32.totalorder %s20, 2
      %s304 = scalar_select %p303, %s20, 2
      %p305 = scmp.lt.s32.totalorder %s302, 1
      %s306 = scalar_select %p305, %s302, 1
      %p307 = scmp.lt.s32.totalorder %s22, 0
      %s308 = scalar_select %p307, %s22, 0
      %s309 = sadd.s32 %s308, %s306
      %s310 = smul.addr %s304, 2
      %s311 = sadd.s32 %s309, %s310
      %s312 = smul.addr %s311, 4
      %s313 = scalar_lea.vmem %s3, %s312
      %s314 = smul.u32 2, %s21
      %p316 = scmp.eq.s32.totalorder %s23, 0
      // Predicated region
      $region33: #{multi_head_cross_attention.2} parent=31 // pred_check
        %p317 = pneg %p316
      $region34: #{multi_head_cross_attention.2} parent=31 // pred_check_branch
        %319 = sbr.rel (%p317) target = $region36
      $region35: #{multi_head_cross_attention.2} parent=31 // pred_region
        %vm320 = vcmask 261120
        %321 = vst.msk [vmem:[#allocation2] sm:$0xff] %vm320, 0.0
        %322 = vst.msk [vmem:[#allocation2 + $0x8] sm:$0xff] %vm320, 0.0
      $region36: #{multi_head_cross_attention.2} parent=31 // pred_fallthru
        _
      %v323 = vld [vmem:[#allocation2] sm:$0xff]
      %v324 = vld [vmem:[#allocation2 + $0x8] sm:$0xff]
      %v325 = vld [vmem:[%s281] sm:$0xff]
      %v326 = vld [vmem:[%s281 + $0x8] sm:$0xff]
      %v327 = vpack.c.bf16 %v326, %v325
      %v328 = vld [vmem:[%s294] sm:$0xf]
      %v329 = vld [vmem:[%s294 + $0x4] sm:$0xf]
      %v330 = vld [vmem:[%s294 + $0x8] sm:$0xf]
      %v331 = vld [vmem:[%s294 + $0xc] sm:$0xf]
      %v336 = vunpack.c.l.b16 %v328
      %v337 = vunpack.c.l.b16 %v329
      %v338 = vunpack.c.l.b16 %v330
      %v339 = vunpack.c.l.b16 %v331
      %v340 = vpack.c.b16 %v337, %v336
      %v341 = vpack.c.b16 %v339, %v338
      %vm344 = vcmask 261120
      %v346 = vsel %vm344, %v327, 0
      %348 = vmatpush.bf16.msra.mxu0 0
      %349 = vmatpush.bf16.msra.mxu0 0
      %350 = vmatpush.bf16.msra.mxu0 0
      %351 = vmatpush.bf16.msra.mxu0 0
      %352 = vmatpush.bf16.msra.mxu0 0
      %353 = vmatpush.bf16.msra.mxu0 0
      %354 = vmatpush.bf16.msra.mxu0 %v341
      %355 = vmatpush.bf16.msra.mxu0 %v340
      %356 = vmatmul.bf16.gmra.mxu0 %v346
      %v357 = vpop.f32.mrf.mxu0
      %v358 = vadd.f32 0.0, %v357
      %v359 = vpop.f32.mrf.mxu0
      %v360 = vadd.f32 0.0, %v359
      %361 = vdwg.mxu0
      %v362 = vadd.f32 %v323, %v358
      %v363 = vadd.f32 %v324, %v360
      %364 = vst.msk [vmem:[#allocation2] sm:$0xff] %vm344, %v362
      %365 = vst.msk [vmem:[#allocation2 + $0x8] sm:$0xff] %vm344, %v363
      // Predicated region
      $region37: #{multi_head_cross_attention.2} parent=31 // pred_check
        %p366 = pneg %p316
      $region38: #{multi_head_cross_attention.2} parent=31 // pred_check_branch
        %368 = sbr.rel (%p366) target = $region40
      $region39: #{multi_head_cross_attention.2} parent=31 // pred_region
        %v369 = vld [vmem:[#allocation2] sm:$0xff]
        %v370 = vld [vmem:[#allocation2 + $0x8] sm:$0xff]
        %v371 = vld [vmem:[%s301] sm:$0x1]
        %v373 = vperm.slane %v371, 0
        %v375 = vadd.f32 %v369, %v373
        %v376 = vadd.f32 %v370, %v373
        %v377 = vpack.c.bf16 %v375, %v375
        %v378 = vpack.c.bf16 %v376, %v376
        %vm379 = vcmask 257024
        %380 = vst.msk [vmem:[%s313] sm:$0xf] %vm379, %v377
        %381 = vst.msk [vmem:[%s313 + $0x4] sm:$0xf] %vm379, %v378
      $region40: #{multi_head_cross_attention.2} parent=31 // pred_fallthru
        _
      %s382 = smul.u32 2, %s21
      %p383 = scmp.lt.s32.totalorder %s20, 2
      %s384 = scalar_select %p383, %s20, 2
      %p385 = scmp.lt.s32.totalorder %s382, 1
      %s386 = scalar_select %p385, %s382, 1
      %p387 = scmp.lt.s32.totalorder %s22, 0
      %s388 = scalar_select %p387, %s22, 0
      %s389 = sadd.s32 %s388, %s386
      %s390 = smul.addr %s384, 2
      %s391 = sadd.s32 %s389, %s390
      %s392 = smul.addr %s391, 4
      %s393 = scalar_lea.vmem %s3, %s392
      // Predicated region
      $region41: #{multi_head_cross_attention.2} parent=31 // pred_check
        %p394 = pneg %p150
      $region42: #{multi_head_cross_attention.2} parent=31 // pred_check_branch
        %396 = sbr.rel (%p394) target = $region44
      $region43: #{multi_head_cross_attention.2} parent=31 // pred_region
        %s397 = smul.u32 2, %s21
      $region44: #{multi_head_cross_attention.2} parent=31 // pred_fallthru
        _
    $region32: #{multi_head_cross_attention.2} parent=5 // pred_fallthru
      _
    %p398 = scmp.le.s32.totalorder 2, %s9
    // Predicated region
    $region45: #{multi_head_cross_attention.2} parent=5 // pred_check
      %p399 = pneg %p398
    $region46: #{multi_head_cross_attention.2} parent=5 // pred_check_branch
      %401 = sbr.rel (%p399) target = $region48
    $region47: #{multi_head_cross_attention.2} parent=5 // pred_region
      %s402 = ssub.s32 %s9, 2
      // Predicated region
      $region49: #{multi_head_cross_attention.2} parent=47 // pred_check
        %p403 = pneg %p156
      $region50: #{multi_head_cross_attention.2} parent=47 // pred_check_branch
        %405 = sbr.rel (%p403) target = $region52
      $region51: #{multi_head_cross_attention.2} parent=47 // pred_region
        %s406 = smul.u32 2, %s25
        %p407 = scmp.lt.s32.totalorder %s24, 2
        %s408 = scalar_select %p407, %s24, 2
        %p409 = scmp.lt.s32.totalorder %s406, 1
        %s410 = scalar_select %p409, %s406, 1
        %p411 = scmp.lt.s32.totalorder %s26, 0
        %s412 = scalar_select %p411, %s26, 0
        %s413 = sadd.s32 %s412, %s410
        %s414 = smul.addr %s408, 2
        %s415 = sadd.s32 %s413, %s414
        %s416 = smul.addr %s415, 4
        %s417 = scalar_lea.vmem %s3, %s416
      $region52: #{multi_head_cross_attention.2} parent=47 // pred_fallthru
        _
    $region48: #{multi_head_cross_attention.2} parent=5 // pred_fallthru
      _
  $region6: #{multi_head_cross_attention.2} parent=0 // loop_footer
    %s13 = sadd.s32 1, %s9
  $region7: #{multi_head_cross_attention.2} parent=0 // loop_footer_branch
    %8 = sbr.rel target = $region3
  $region8: #{multi_head_cross_attention.2} parent=0 // loop_exit
    _

// kernel: multi_head_cross_attention.3
$region0: #{multi_head_cross_attention.3}
  #allocation0 [shape = 'u32[]', space=smem, size = 0x4, offset = 0x4, fixed_abs, tag = 'smem constant byte address 0x4 - core index']
  #allocation1 [shape = 'u32[72,128]{1,0:T(1,128)}', space=vmem, size = 0x9000, scoped, tag = 'internal scratch']
  #allocation2 [shape = 'f32[8,32]{1,0:T(8,128)}', space=vmem, size = 0x1000, scoped, tag = 'scratch operand']
  #allocation3 [shape = 'f32[8,32]{1,0:T(8,128)}', space=vmem, size = 0x1000, scoped, tag = 'scratch operand']
  %s0 = inlined_call_operand.vmem [shape: bf16[2,8,32], index: 0, kind: input, shape index: {}]
  %s1 = inlined_call_operand.vmem [shape: bf16[2,8,32], index: 1, kind: input, shape index: {}]
  %s2 = inlined_call_operand.vmem [shape: bf16[2,8,32], index: 2, kind: input, shape index: {}]
  %s3 = inlined_call_operand.vmem [shape: bf16[32,32], index: 3, kind: input, shape index: {}]
  %s4 = inlined_call_operand.vmem [shape: f32[1,32], index: 4, kind: input, shape index: {}]
  %s5 = inlined_call_operand.hbm [shape: f32[2,8,32], index: 5, kind: output, shape index: {0}]
  %s6 = inlined_call_operand.hbm [shape: f32[2,8,8,8], index: 6, kind: output, shape index: {1}]
  %7 = xla_tuple %s5, %s6
  %s8 = sld [smem:[#allocation0]]
  $region69: #{multi_head_cross_attention.3} parent=0
    _
  %s10 = ssub.s32 1, %s8
  %s11 = scalar_select 0, %s10, %s8
  $region1: #{multi_head_cross_attention.3} parent=0
    #allocation4 [shape = 'u8[8192]{0}', space=vmem, size = 0x2000, scoped, tag = 'output window, operand 0']
    #allocation5 [shape = 's32[2]{0}', space=sflag, size = 0x8, scoped, tag = 'scoped memory for multi_head_cross_attention.3']
    #allocation6 [shape = 'u8[65536]{0}', space=vmem, size = 0x10000, scoped, tag = 'output window, operand 1']
    #allocation7 [shape = 's32[2]{0}', space=sflag, size = 0x8, scoped, tag = 'scoped memory for multi_head_cross_attention.3']
    %12 = vsyncpa [#allocation5], 0
    %s13 = scalar_lea.sflag [#allocation5], 1
    %14 = vsyncpa %s13, 0
    %15 = vsyncpa [#allocation7], 0
    %s16 = scalar_lea.sflag [#allocation7], 1
    %17 = vsyncpa %s16, 0
    loop: start=0, step=1, limit=4
    $region2: #{multi_head_cross_attention.3} parent=1 // loop_pre_header
      _
    $region3: #{multi_head_cross_attention.3} parent=1 // loop_header
      %s19 = sphi 0, %s23
      %p20 = scmp.ge.s32.totalorder %s19, 4
      %s26 = sphi 0, %s45
      %s27 = sphi 0, %s41
      %s28 = sphi 0, %s37
      %s29 = sphi 0, %s26
      %s30 = sphi 0, %s27
      %s31 = sphi 0, %s28
      %s32 = sphi 0, %s29
      %s33 = sphi 0, %s30
      %s34 = sphi 0, %s31
      %s52 = sphi 0, %s54
      %s55 = sphi 0, %s52
      %s56 = sphi 0, %s55
      %s72 = sphi 0, %s56
      %s80 = sphi 0, %s82
      %s83 = sphi 0, %s80
      %s84 = sphi 0, %s83
      %s100 = sphi 0, %s84
      %s108 = sphi 0, %s110
      %s111 = sphi 0, %s108
      %s112 = sphi 0, %s111
      %s128 = sphi 0, %s112
      %s134 = sphi 0, %s136
      %s137 = sphi 0, %s134
      %s138 = sphi 0, %s137
      %s154 = sphi 0, %s138
      %s158 = sphi 0, %s158
      %s160 = sphi 0, %s158
      %s161 = sphi 0, %s160
      %s175 = sphi 0, %s161
      %s183 = sphi 0, %s185
      %s186 = sphi 0, %s183
      %s187 = sphi 0, %s186
      %s203 = sphi 0, %s187
      %s213 = sphi 0, %s215
      %s216 = sphi 0, %s213
      %s217 = sphi 0, %s216
      %s233 = sphi 0, %s217
    $region4: #{multi_head_cross_attention.3} parent=1 // loop_header_branch
      %22 = sbr.rel (%p20) target = $region8
    $region5: #{multi_head_cross_attention.3} parent=1 // loop_body
      %s24 = ssub.s32 %s19, 1
      %s25 = ssub.s32 %s19, 2
      %s35 = sadd.s32 1, %s28
      %p36 = scmp.ge.s32.totalorder %s35, 1
      %s37 = scalar_select %p36, 0, %s35
      %s38 = sadd.s32 1, %s27
      %s39 = scalar_select %p36, %s38, %s27
      %p40 = scmp.ge.s32.totalorder %s39, 1
      %s41 = scalar_select %p40, 0, %s39
      %s42 = sadd.s32 1, %s26
      %s43 = scalar_select %p40, %s42, %s26
      %p44 = scmp.ge.s32.totalorder %s43, 2
      %s45 = scalar_select %p44, 0, %s43
      %s46 = ssub.s32 %s26, %s45
      %s47 = ssub.s32 %s27, %s41
      %s48 = sor.u32 %s46, %s47
      %s49 = ssub.s32 %s28, %s37
      %s50 = sor.u32 %s48, %s49
      %p51 = scmp.eq.s32.totalorder %s50, 0
      %s53 = sadd.s32 %s52, 1
      %s54 = scalar_select %p51, %s52, %s53
      %p57 = pneg %p51
      %p58 = scmp.eq.s32.totalorder %s19, 1
      %p59 = por %p57, %p58
      %p60 = scmp.ne.s32.totalorder %s52, %s55
      %p61 = scmp.eq.s32.totalorder %s19, 0
      %p62 = por %p60, %p61
      %p63 = scmp.ne.s32.totalorder %s52, %s55
      %p64 = scmp.eq.s32.totalorder %s24, 1
      %p65 = por %p63, %p64
      %p66 = scmp.ne.s32.totalorder %s55, %s56
      %p67 = scmp.eq.s32.totalorder %s24, 0
      %p68 = por %p66, %p67
      %p69 = scmp.ne.s32.totalorder %s55, %s56
      %p70 = scmp.eq.s32.totalorder %s25, 1
      %p71 = por %p69, %p70
      %p73 = scmp.ne.s32.totalorder %s56, %s72
      %p74 = scmp.eq.s32.totalorder %s25, 0
      %p75 = por %p73, %p74
      %s76 = ssub.s32 %s26, %s45
      %s77 = ssub.s32 %s28, %s37
      %s78 = sor.u32 %s76, %s77
      %p79 = scmp.eq.s32.totalorder %s78, 0
      %s81 = sadd.s32 %s80, 1
      %s82 = scalar_select %p79, %s80, %s81
      %p85 = pneg %p79
      %p86 = scmp.eq.s32.totalorder %s19, 1
      %p87 = por %p85, %p86
      %p88 = scmp.ne.s32.totalorder %s80, %s83
      %p89 = scmp.eq.s32.totalorder %s19, 0
      %p90 = por %p88, %p89
      %p91 = scmp.ne.s32.totalorder %s80, %s83
      %p92 = scmp.eq.s32.totalorder %s24, 1
      %p93 = por %p91, %p92
      %p94 = scmp.ne.s32.totalorder %s83, %s84
      %p95 = scmp.eq.s32.totalorder %s24, 0
      %p96 = por %p94, %p95
      %p97 = scmp.ne.s32.totalorder %s83, %s84
      %p98 = scmp.eq.s32.totalorder %s25, 1
      %p99 = por %p97, %p98
      %p101 = scmp.ne.s32.totalorder %s84, %s100
      %p102 = scmp.eq.s32.totalorder %s25, 0
      %p103 = por %p101, %p102
      %s104 = ssub.s32 %s26, %s45
      %s105 = ssub.s32 %s28, %s37
      %s106 = sor.u32 %s104, %s105
      %p107 = scmp.eq.s32.totalorder %s106, 0
      %s109 = sadd.s32 %s108, 1
      %s110 = scalar_select %p107, %s108, %s109
      %p113 = pneg %p107
      %p114 = scmp.eq.s32.totalorder %s19, 1
      %p115 = por %p113, %p114
      %p116 = scmp.ne.s32.totalorder %s108, %s111
      %p117 = scmp.eq.s32.totalorder %s19, 0
      %p118 = por %p116, %p117
      %p119 = scmp.ne.s32.totalorder %s108, %s111
      %p120 = scmp.eq.s32.totalorder %s24, 1
      %p121 = por %p119, %p120
      %p122 = scmp.ne.s32.totalorder %s111, %s112
      %p123 = scmp.eq.s32.totalorder %s24, 0
      %p124 = por %p122, %p123
      %p125 = scmp.ne.s32.totalorder %s111, %s112
      %p126 = scmp.eq.s32.totalorder %s25, 1
      %p127 = por %p125, %p126
      %p129 = scmp.ne.s32.totalorder %s112, %s128
      %p130 = scmp.eq.s32.totalorder %s25, 0
      %p131 = por %p129, %p130
      %s132 = ssub.s32 %s28, %s37
      %p133 = scmp.eq.s32.totalorder %s132, 0
      %s135 = sadd.s32 %s134, 1
      %s136 = scalar_select %p133, %s134, %s135
      %p139 = pneg %p133
      %p140 = scmp.eq.s32.totalorder %s19, 1
      %p141 = por %p139, %p140
      %p142 = scmp.ne.s32.totalorder %s134, %s137
      %p143 = scmp.eq.s32.totalorder %s19, 0
      %p144 = por %p142, %p143
      %p145 = scmp.ne.s32.totalorder %s134, %s137
      %p146 = scmp.eq.s32.totalorder %s24, 1
      %p147 = por %p145, %p146
      %p148 = scmp.ne.s32.totalorder %s137, %s138
      %p149 = scmp.eq.s32.totalorder %s24, 0
      %p150 = por %p148, %p149
      %p151 = scmp.ne.s32.totalorder %s137, %s138
      %p152 = scmp.eq.s32.totalorder %s25, 1
      %p153 = por %p151, %p152
      %p155 = scmp.ne.s32.totalorder %s138, %s154
      %p156 = scmp.eq.s32.totalorder %s25, 0
      %p157 = por %p155, %p156
      %s159 = sadd.s32 %s158, 1
      %p162 = scmp.eq.s32.totalorder %s19, 1
      %p163 = scmp.ne.s32.totalorder %s158, %s160
      %p164 = scmp.eq.s32.totalorder %s19, 0
      %p165 = por %p163, %p164
      %p166 = scmp.ne.s32.totalorder %s158, %s160
      %p167 = scmp.eq.s32.totalorder %s24, 1
      %p168 = por %p166, %p167
      %p169 = scmp.ne.s32.totalorder %s160, %s161
      %p170 = scmp.eq.s32.totalorder %s24, 0
      %p171 = por %p169, %p170
      %p172 = scmp.ne.s32.totalorder %s160, %s161
      %p173 = scmp.eq.s32.totalorder %s25, 1
      %p174 = por %p172, %p173
      %p176 = scmp.ne.s32.totalorder %s161, %s175
      %p177 = scmp.eq.s32.totalorder %s25, 0
      %p178 = por %p176, %p177
      %s179 = ssub.s32 %s26, %s45
      %s180 = ssub.s32 %s27, %s41
      %s181 = sor.u32 %s179, %s180
      %p182 = scmp.eq.s32.totalorder %s181, 0
      %s184 = sadd.s32 %s183, 1
      %s185 = scalar_select %p182, %s183, %s184
      %p188 = pneg %p182
      %p189 = scmp.eq.s32.totalorder %s19, 1
      %p190 = por %p188, %p189
      %p191 = scmp.ne.s32.totalorder %s183, %s186
      %p192 = scmp.eq.s32.totalorder %s19, 0
      %p193 = por %p191, %p192
      %p194 = scmp.ne.s32.totalorder %s183, %s186
      %p195 = scmp.eq.s32.totalorder %s24, 1
      %p196 = por %p194, %p195
      %p197 = scmp.ne.s32.totalorder %s186, %s187
      %p198 = scmp.eq.s32.totalorder %s24, 0
      %p199 = por %p197, %p198
      %p200 = scmp.ne.s32.totalorder %s186, %s187
      %p201 = scmp.eq.s32.totalorder %s25, 1
      %p202 = por %p200, %p201
      %p204 = scmp.ne.s32.totalorder %s187, %s203
      %p205 = scmp.eq.s32.totalorder %s25, 0
      %p206 = por %p204, %p205
      %s207 = ssub.s32 %s26, %s45
      %s208 = ssub.s32 %s28, %s37
      %s209 = sor.u32 %s207, %s208
      %s210 = ssub.s32 %s27, %s41
      %s211 = sor.u32 %s209, %s210
      %p212 = scmp.eq.s32.totalorder %s211, 0
      %s214 = sadd.s32 %s213, 1
      %s215 = scalar_select %p212, %s213, %s214
      %p218 = pneg %p212
      %p219 = scmp.eq.s32.totalorder %s19, 1
      %p220 = por %p218, %p219
      %p221 = scmp.ne.s32.totalorder %s213, %s216
      %p222 = scmp.eq.s32.totalorder %s19, 0
      %p223 = por %p221, %p222
      %p224 = scmp.ne.s32.totalorder %s213, %s216
      %p225 = scmp.eq.s32.totalorder %s24, 1
      %p226 = por %p224, %p225
      %p227 = scmp.ne.s32.totalorder %s216, %s217
      %p228 = scmp.eq.s32.totalorder %s24, 0
      %p229 = por %p227, %p228
      %p230 = scmp.ne.s32.totalorder %s216, %s217
      %p231 = scmp.eq.s32.totalorder %s25, 1
      %p232 = por %p230, %p231
      %p234 = scmp.ne.s32.totalorder %s217, %s233
      %p235 = scmp.eq.s32.totalorder %s25, 0
      %p236 = por %p234, %p235
      %p237 = scmp.le.s32.totalorder 1, %s19
      %p238 = scmp.lt.s32.totalorder %s19, 3
      %p239 = pnand %p237, %p238
      %p240 = pneg %p239
      // Predicated region
      $region9: #{multi_head_cross_attention.3} parent=5 // pred_check
        _
      $region10: #{multi_head_cross_attention.3} parent=5 // pred_check_branch
        %242 = sbr.rel (%p239) target = $region12
      $region11: #{multi_head_cross_attention.3} parent=5 // pred_region
        %s243 = ssub.s32 %s19, 1
        // Predicated region
        $region13: #{multi_head_cross_attention.3} parent=11 // pred_check
          %p244 = pneg %p150
        $region14: #{multi_head_cross_attention.3} parent=11 // pred_check_branch
          %246 = sbr.rel (%p244) target = $region16
        $region15: #{multi_head_cross_attention.3} parent=11 // pred_region
          %s247 = smul.u32 4, %s31
          %p248 = scmp.lt.s32.totalorder %s247, 3
          %s249 = scalar_select %p248, %s247, 3
          %s250 = smul.addr %s249, 4
          %s251 = scalar_lea.vmem %s3, %s250
          %s252 = smul.u32 4, %s31
        $region16: #{multi_head_cross_attention.3} parent=11 // pred_fallthru
          _
        // Predicated region
        $region17: #{multi_head_cross_attention.3} parent=11 // pred_check
          %p253 = pneg %p171
        $region18: #{multi_head_cross_attention.3} parent=11 // pred_check_branch
          %255 = sbr.rel (%p253) target = $region20
        $region19: #{multi_head_cross_attention.3} parent=11 // pred_region
          _
        $region20: #{multi_head_cross_attention.3} parent=11 // pred_fallthru
          _
      $region12: #{multi_head_cross_attention.3} parent=5 // pred_fallthru
        _
      %p256 = scmp.lt.s32.totalorder %s19, 2
      // Predicated region
      $region21: #{multi_head_cross_attention.3} parent=5 // pred_check
        %p257 = pneg %p256
      $region22: #{multi_head_cross_attention.3} parent=5 // pred_check_branch
        %259 = sbr.rel (%p257) target = $region24
      $region23: #{multi_head_cross_attention.3} parent=5 // pred_region
        // Predicated region
        $region25: #{multi_head_cross_attention.3} parent=23 // pred_check
          %p260 = pneg %p62
        $region26: #{multi_head_cross_attention.3} parent=23 // pred_check_branch
          %262 = sbr.rel (%p260) target = $region28
        $region27: #{multi_head_cross_attention.3} parent=23 // pred_region
          %p263 = scmp.lt.s32.totalorder %s26, 1
          %s264 = scalar_select %p263, %s26, 1
          %p265 = scmp.lt.s32.totalorder %s27, 0
          %s266 = scalar_select %p265, %s27, 0
          %p267 = scmp.lt.s32.totalorder %s28, 0
          %s268 = scalar_select %p267, %s28, 0
          %s269 = sadd.s32 %s268, %s266
          %s270 = sadd.s32 %s269, %s264
          %s271 = smul.addr %s270, 4
          %s272 = scalar_lea.vmem %s0, %s271
        $region28: #{multi_head_cross_attention.3} parent=23 // pred_fallthru
          _
        // Predicated region
        $region29: #{multi_head_cross_attention.3} parent=23 // pred_check
          %p273 = pneg %p90
        $region30: #{multi_head_cross_attention.3} parent=23 // pred_check_branch
          %275 = sbr.rel (%p273) target = $region32
        $region31: #{multi_head_cross_attention.3} parent=23 // pred_region
          %p276 = scmp.lt.s32.totalorder %s26, 1
          %s277 = scalar_select %p276, %s26, 1
          %p278 = scmp.lt.s32.totalorder %s28, 0
          %s279 = scalar_select %p278, %s28, 0
          %s280 = sadd.s32 %s279, %s277
          %s281 = smul.addr %s280, 4
          %s282 = scalar_lea.vmem %s1, %s281
        $region32: #{multi_head_cross_attention.3} parent=23 // pred_fallthru
          _
        // Predicated region
        $region33: #{multi_head_cross_attention.3} parent=23 // pred_check
          %p283 = pneg %p118
        $region34: #{multi_head_cross_attention.3} parent=23 // pred_check_branch
          %285 = sbr.rel (%p283) target = $region36
        $region35: #{multi_head_cross_attention.3} parent=23 // pred_region
          %p286 = scmp.lt.s32.totalorder %s26, 1
          %s287 = scalar_select %p286, %s26, 1
          %p288 = scmp.lt.s32.totalorder %s28, 0
          %s289 = scalar_select %p288, %s28, 0
          %s290 = sadd.s32 %s289, %s287
          %s291 = smul.addr %s290, 4
          %s292 = scalar_lea.vmem %s2, %s291
        $region36: #{multi_head_cross_attention.3} parent=23 // pred_fallthru
          _
      $region24: #{multi_head_cross_attention.3} parent=5 // pred_fallthru
        _
      %p293 = scmp.le.s32.totalorder 1, %s19
      %p294 = scmp.lt.s32.totalorder %s19, 3
      %p295 = pnand %p293, %p294
      %p296 = pneg %p295
      // Predicated region
      $region37: #{multi_head_cross_attention.3} parent=5 // pred_check
        _
      $region38: #{multi_head_cross_attention.3} parent=5 // pred_check_branch
        %298 = sbr.rel (%p295) target = $region40
      $region39: #{multi_head_cross_attention.3} parent=5 // pred_region
        %s299 = ssub.s32 %s19, 1
        %p300 = scmp.lt.s32.totalorder %s29, 1
        %s301 = scalar_select %p300, %s29, 1
        %p302 = scmp.lt.s32.totalorder %s30, 0
        %s303 = scalar_select %p302, %s30, 0
        %p304 = scmp.lt.s32.totalorder %s31, 0
        %s305 = scalar_select %p304, %s31, 0
        %s306 = sadd.s32 %s305, %s303
        %s307 = sadd.s32 %s306, %s301
        %s308 = smul.addr %s307, 4
        %s309 = scalar_lea.vmem %s0, %s308
        %p310 = pneg %p68
        %p311 = pneg %p65
        %p312 = scmp.lt.s32.totalorder %s29, 1
        %s313 = scalar_select %p312, %s29, 1
        %p314 = scmp.lt.s32.totalorder %s31, 0
        %s315 = scalar_select %p314, %s31, 0
        %s316 = sadd.s32 %s315, %s313
        %s317 = smul.addr %s316, 4
        %s318 = scalar_lea.vmem %s1, %s317
        %p319 = pneg %p96
        %p320 = pneg %p93
        %p321 = scmp.lt.s32.totalorder %s29, 1
        %s322 = scalar_select %p321, %s29, 1
        %p323 = scmp.lt.s32.totalorder %s31, 0
        %s324 = scalar_select %p323, %s31, 0
        %s325 = sadd.s32 %s324, %s322
        %s326 = smul.addr %s325, 4
        %s327 = scalar_lea.vmem %s2, %s326
        %p328 = pneg %p124
        %p329 = pneg %p121
        %s330 = smul.u32 4, %s31
        %p331 = scmp.lt.s32.totalorder %s330, 3
        %s332 = scalar_select %p331, %s330, 3
        %s333 = smul.addr %s332, 4
        %s334 = scalar_lea.vmem %s3, %s333
        %p335 = pneg %p150
        %p336 = pneg %p147
        %p337 = pneg %p171
        %p338 = pneg %p168
        %p339 = pneg %p199
        %p340 = pneg %p196
        %s341 = sand.u32 %s186, 1
        %s342 = scalar_lea.sflag [#allocation5], %s341
        %s343 = sand.u32 %s186, 1
        %s344 = smul.addr %s343, 8
        %s345 = scalar_lea.vmem [#allocation4], %s344
        %p346 = pneg %p229
        %p347 = pneg %p226
        %s348 = sand.u32 %s216, 1
        %s349 = scalar_lea.sflag [#allocation7], %s348
        %s350 = sand.u32 %s216, 1
        %s351 = smul.addr %s350, 64
        %s352 = scalar_lea.vmem [#allocation6], %s351
        %p353 = scmp.lt.s32.totalorder %s29, 1
        %s354 = scalar_select %p353, %s29, 1
        %p355 = scmp.lt.s32.totalorder %s30, 0
        %s356 = scalar_select %p355, %s30, 0
        %p357 = scmp.lt.s32.totalorder %s31, 0
        %s358 = scalar_select %p357, %s31, 0
        %s359 = sadd.s32 %s358, %s356
        %s360 = sadd.s32 %s359, %s354
        %s361 = smul.addr %s360, 4
        %s362 = scalar_lea.vmem %s0, %s361
        %p363 = scmp.lt.s32.totalorder %s29, 1
        %s364 = scalar_select %p363, %s29, 1
        %p365 = scmp.lt.s32.totalorder %s31, 0
        %s366 = scalar_select %p365, %s31, 0
        %s367 = sadd.s32 %s366, %s364
        %s368 = smul.addr %s367, 4
        %s369 = scalar_lea.vmem %s1, %s368
        %p370 = scmp.lt.s32.totalorder %s29, 1
        %s371 = scalar_select %p370, %s29, 1
        %p372 = scmp.lt.s32.totalorder %s31, 0
        %s373 = scalar_select %p372, %s31, 0
        %s374 = sadd.s32 %s373, %s371
        %s375 = smul.addr %s374, 4
        %s376 = scalar_lea.vmem %s2, %s375
        %s377 = smul.u32 4, %s31
        %p378 = scmp.lt.s32.totalorder %s377, 3
        %s379 = scalar_select %p378, %s377, 3
        %s380 = smul.addr %s379, 4
        %s381 = scalar_lea.vmem %s3, %s380
        %s382 = smul.u32 4, %s31
        %s383 = smul.u32 8, %s31
        %p385 = scmp.eq.s32.totalorder %s31, 0
        // Predicated region
        $region41: #{multi_head_cross_attention.3} parent=39 // pred_check
          %p386 = pneg %p385
        $region42: #{multi_head_cross_attention.3} parent=39 // pred_check_branch
          %388 = sbr.rel (%p386) target = $region44
        $region43: #{multi_head_cross_attention.3} parent=39 // pred_region
          %vm389 = vcmask 261120
          %390 = vst.msk [vmem:[#allocation3] sm:$0xff] %vm389, 0.0
        $region44: #{multi_head_cross_attention.3} parent=39 // pred_fallthru
          _
        %v391 = vld [vmem:[%s362] sm:$0xf]
        %v392 = vld [vmem:[%s369] sm:$0xf]
        %v393 = vld [vmem:[%s376] sm:$0xf]
        %vm394 = vcmask 31744
        %v396 = vsel %vm394, %v391, 0
        %v399 = vsel %vm394, %v392, 0
        %401 = vmatpush.bf16.xpose.msra.mxu0 0
        %402 = vmatpush.bf16.xpose.msra.mxu0 0
        %403 = vmatpush.bf16.xpose.msra.mxu0 0
        %404 = vmatpush.bf16.xpose.msra.mxu0 0
        %405 = vmatpush.bf16.xpose.msra.mxu0 0
        %406 = vmatpush.bf16.xpose.msra.mxu0 0
        %407 = vmatpush.bf16.xpose.msra.mxu0 0
        %408 = vmatpush.bf16.xpose.msra.mxu0 %v399
        %409 = vmatmul.bf16.gmra.mxu0 %v396
        %v410 = vpop.f32.mrf.mxu0
        %v411 = vadd.f32 0.0, %v410
        %v412 = vpop.f32.mrf.mxu0
        %413 = vdwg.mxu0
        %vm414 = vcmask 64512
        %v415 = vsel %vm414, %v411, -inf
        %416 = vmax.xlane.f32.xlu0 %v415
        %v417 = vpop.xlane.xlu0 %416
        %v418 = vsub.f32 %v411, %v417
        %v419 = vmul.f32 %v418, 1.442695
        %v420 = vpow.pop %v419
        %v421 = vsel %vm414, %v420, 0.0
        %422 = vadd.xlane.f32.xlu0 %v421
        %v423 = vpop.xlane.xlu0 %422
        %v424 = vrcp.pop %v423
        %v425 = vmul.f32 %v423, %v424
        %v426 = vsub.f32 1.0, %v425
        %v427 = vmul.f32 %v424, %v426
        %v428 = vadd.f32 %v424, %v427
        %vm429 = vweird.f32 %v423
        %vm430 = vweird.f32 %v424
        %vm431 = vmor %vm429, %vm430
        %v432 = vsel %vm431, %v424, %v428
        %v433 = vand.u32 2147483647, %v423
        %vm434 = vcmp.eq.f32.partialorder %v433, 8.507059e+37
        %v435 = vand.u32 %v423, 2147483648
        %v436 = vor.u32 1.1754944e-38, %v435
        %v437 = vsel %vm434, %v436, %v432
        %v438 = vmul.f32 %v420, %v437
        %439 = vst.msk [vmem:[%s352] sm:$0xff] %vm414, %v438
        %v440 = vpack.c.bf16 %v438, %v438
        %v442 = vsel %vm414, %v440, 0
        %vm444 = vcmask 1043456
        %v446 = vsel %vm444, %v393, 0
        %448 = vmatpush.bf16.msra.mxu0 0
        %449 = vmatpush.bf16.msra.mxu0 0
        %450 = vmatpush.bf16.msra.mxu0 0
        %451 = vmatpush.bf16.msra.mxu0 0
        %452 = vmatpush.bf16.msra.mxu0 0
        %453 = vmatpush.bf16.msra.mxu0 0
        %454 = vmatpush.bf16.msra.mxu0 0
        %455 = vmatpush.bf16.msra.mxu0 %v446
        %456 = vmatmul.bf16.gmra.mxu0 %v442
        %v457 = vpop.f32.mrf.mxu0
        %v458 = vadd.f32 0.0, %v457
        %v459 = vpop.f32.mrf.mxu0
        %460 = vdwg.mxu0
        %461 = vst.msk [vmem:[#allocation2] sm:$0xff] %vm394, %v458
        %v462 = vld [vmem:[%s362] sm:$0xf]
        %v463 = vld [vmem:[%s369] sm:$0xf]
        %v464 = vld [vmem:[%s376] sm:$0xf]
        %v466 = vunpack.c.l.b16 %v462
        %v467 = vpack.c.b16 %v466, %v466
        %468 = vrot.lane.b32.xlu0 %v467, 124
        %v469 = vpop.permute.xlu0 %468
        %v471 = vunpack.c.l.b16 %v463
        %v472 = vpack.c.b16 %v471, %v471
        %473 = vrot.lane.b32.xlu0 %v472, 124
        %v474 = vpop.permute.xlu0 %473
        %v476 = vsel %vm394, %v469, 0
        %v479 = vsel %vm394, %v474, 0
        %481 = vmatpush.bf16.xpose.msra.mxu0 0
        %482 = vmatpush.bf16.xpose.msra.mxu0 0
        %483 = vmatpush.bf16.xpose.msra.mxu0 0
        %484 = vmatpush.bf16.xpose.msra.mxu0 0
        %485 = vmatpush.bf16.xpose.msra.mxu0 0
        %486 = vmatpush.bf16.xpose.msra.mxu0 0
        %487 = vmatpush.bf16.xpose.msra.mxu0 0
        %488 = vmatpush.bf16.xpose.msra.mxu0 %v479
        %489 = vmatmul.bf16.gmra.mxu0 %v476
        %v490 = vpop.f32.mrf.mxu0
        %v491 = vadd.f32 0.0, %v490
        %v492 = vpop.f32.mrf.mxu0
        %493 = vdwg.mxu0
        %v494 = vsel %vm414, %v491, -inf
        %495 = vmax.xlane.f32.xlu0 %v494
        %v496 = vpop.xlane.xlu0 %495
        %v497 = vsub.f32 %v491, %v496
        %v498 = vmul.f32 %v497, 1.442695
        %v499 = vpow.pop %v498
        %v500 = vsel %vm414, %v499, 0.0
        %501 = vadd.xlane.f32.xlu0 %v500
        %v502 = vpop.xlane.xlu0 %501
        %v503 = vrcp.pop %v502
        %v504 = vmul.f32 %v502, %v503
        %v505 = vsub.f32 1.0, %v504
        %v506 = vmul.f32 %v503, %v505
        %v507 = vadd.f32 %v503, %v506
        %vm508 = vweird.f32 %v502
        %vm509 = vweird.f32 %v503
        %vm510 = vmor %vm508, %vm509
        %v511 = vsel %vm510, %v503, %v507
        %v512 = vand.u32 2147483647, %v502
        %vm513 = vcmp.eq.f32.partialorder %v512, 8.507059e+37
        %v514 = vand.u32 %v502, 2147483648
        %v515 = vor.u32 1.1754944e-38, %v514
        %v516 = vsel %vm513, %v515, %v511
        %v517 = vmul.f32 %v499, %v516
        %s518 = scalar_lea.vmem %s352, 8 [#allocation6]
        %519 = vst.msk [vmem:[%s518] sm:$0xff] %vm414, %v517
        %v520 = vpack.c.bf16 %v517, %v517
        %v522 = vunpack.c.l.b16 %v464
        %v523 = vpack.c.b16 %v522, %v522
        %524 = vrot.lane.b32.xlu0 %v523, 124
        %v525 = vpop.permute.xlu0 %524
        %v527 = vsel %vm414, %v520, 0
        %v530 = vsel %vm444, %v525, 0
        %532 = vmatpush.bf16.msra.mxu0 0
        %533 = vmatpush.bf16.msra.mxu0 0
        %534 = vmatpush.bf16.msra.mxu0 0
        %535 = vmatpush.bf16.msra.mxu0 0
        %536 = vmatpush.bf16.msra.mxu0 0
        %537 = vmatpush.bf16.msra.mxu0 0
        %538 = vmatpush.bf16.msra.mxu0 0
        %539 = vmatpush.bf16.msra.mxu0 %v530
        %540 = vmatmul.bf16.gmra.mxu0 %v527
        %v541 = vpop.f32.mrf.mxu0
        %v542 = vadd.f32 0.0, %v541
        %v543 = vpop.f32.mrf.mxu0
        %544 = vdwg.mxu0
        %546 = vrot.lane.b32.xlu0 %v542, 4
        %v547 = vpop.permute.xlu0 %546
        %vm549 = vcmask 64544
        %550 = vst.msk [vmem:[#allocation2] sm:$0xff] %vm549, %v547
        %v551 = vld [vmem:[%s362] sm:$0xf]
        %v552 = vld [vmem:[%s369] sm:$0xf]
        %v553 = vld [vmem:[%s376] sm:$0xf]
        %v555 = vunpack.c.l.b16 %v551
        %v556 = vpack.c.b16 %v555, %v555
        %557 = vrot.lane.b32.xlu0 %v556, 120
        %v558 = vpop.permute.xlu0 %557
        %v560 = vunpack.c.l.b16 %v552
        %v561 = vpack.c.b16 %v560, %v560
        %562 = vrot.lane.b32.xlu0 %v561, 120
        %v563 = vpop.permute.xlu0 %562
        %v565 = vsel %vm394, %v558, 0
        %v568 = vsel %vm394, %v563, 0
        %570 = vmatpush.bf16.xpose.msra.mxu0 0
        %571 = vmatpush.bf16.xpose.msra.mxu0 0
        %572 = vmatpush.bf16.xpose.msra.mxu0 0
        %573 = vmatpush.bf16.xpose.msra.mxu0 0
        %574 = vmatpush.bf16.xpose.msra.mxu0 0
        %575 = vmatpush.bf16.xpose.msra.mxu0 0
        %576 = vmatpush.bf16.xpose.msra.mxu0 0
        %577 = vmatpush.bf16.xpose.msra.mxu0 %v568
        %578 = vmatmul.bf16.gmra.mxu0 %v565
        %v579 = vpop.f32.mrf.mxu0
        %v580 = vadd.f32 0.0, %v579
        %v581 = vpop.f32.mrf.mxu0
        %582 = vdwg.mxu0
        %v583 = vsel %vm414, %v580, -inf
        %584 = vmax.xlane.f32.xlu0 %v583
        %v585 = vpop.xlane.xlu0 %584
        %v586 = vsub.f32 %v580, %v585
        %v587 = vmul.f32 %v586, 1.442695
        %v588 = vpow.pop %v587
        %v589 = vsel %vm414, %v588, 0.0
        %590 = vadd.xlane.f32.xlu0 %v589
        %v591 = vpop.xlane.xlu0 %590
        %v592 = vrcp.pop %v591
        %v593 = vmul.f32 %v591, %v592
        %v594 = vsub.f32 1.0, %v593
        %v595 = vmul.f32 %v592, %v594
        %v596 = vadd.f32 %v592, %v595
        %vm597 = vweird.f32 %v591
        %vm598 = vweird.f32 %v592
        %vm599 = vmor %vm597, %vm598
        %v600 = vsel %vm599, %v592, %v596
        %v601 = vand.u32 2147483647, %v591
        %vm602 = vcmp.eq.f32.partialorder %v601, 8.507059e+37
        %v603 = vand.u32 %v591, 2147483648
        %v604 = vor.u32 1.1754944e-38, %v603
        %v605 = vsel %vm602, %v604, %v600
        %v606 = vmul.f32 %v588, %v605
        %s607 = scalar_lea.vmem %s352, 16 [#allocation6]
        %608 = vst.msk [vmem:[%s607] sm:$0xff] %vm414, %v606
        %v609 = vpack.c.bf16 %v606, %v606
        %v611 = vunpack.c.l.b16 %v553
        %v612 = vpack.c.b16 %v611, %v611
        %613 = vrot.lane.b32.xlu0 %v612, 120
        %v614 = vpop.permute.xlu0 %613
        %v616 = vsel %vm414, %v609, 0
        %v619 = vsel %vm444, %v614, 0
        %621 = vmatpush.bf16.msra.mxu0 0
        %622 = vmatpush.bf16.msra.mxu0 0
        %623 = vmatpush.bf16.msra.mxu0 0
        %624 = vmatpush.bf16.msra.mxu0 0
        %625 = vmatpush.bf16.msra.mxu0 0
        %626 = vmatpush.bf16.msra.mxu0 0
        %627 = vmatpush.bf16.msra.mxu0 0
        %628 = vmatpush.bf16.msra.mxu0 %v619
        %629 = vmatmul.bf16.gmra.mxu0 %v616
        %v630 = vpop.f32.mrf.mxu0
        %v631 = vadd.f32 0.0, %v630
        %v632 = vpop.f32.mrf.mxu0
        %633 = vdwg.mxu0
        %635 = vrot.lane.b32.xlu0 %v631, 8
        %v636 = vpop.permute.xlu0 %635
        %vm638 = vcmask 97344
        %639 = vst.msk [vmem:[#allocation2] sm:$0xff] %vm638, %v636
        %v640 = vld [vmem:[%s362] sm:$0xf]
        %v641 = vld [vmem:[%s369] sm:$0xf]
        %v642 = vld [vmem:[%s376] sm:$0xf]
        %v644 = vunpack.c.l.b16 %v640
        %v645 = vpack.c.b16 %v644, %v644
        %646 = vrot.lane.b32.xlu0 %v645, 116
        %v647 = vpop.permute.xlu0 %646
        %v649 = vunpack.c.l.b16 %v641
        %v650 = vpack.c.b16 %v649, %v649
        %651 = vrot.lane.b32.xlu0 %v650, 116
        %v652 = vpop.permute.xlu0 %651
        %v654 = vsel %vm394, %v647, 0
        %v657 = vsel %vm394, %v652, 0
        %659 = vmatpush.bf16.xpose.msra.mxu0 0
        %660 = vmatpush.bf16.xpose.msra.mxu0 0
        %661 = vmatpush.bf16.xpose.msra.mxu0 0
        %662 = vmatpush.bf16.xpose.msra.mxu0 0
        %663 = vmatpush.bf16.xpose.msra.mxu0 0
        %664 = vmatpush.bf16.xpose.msra.mxu0 0
        %665 = vmatpush.bf16.xpose.msra.mxu0 0
        %666 = vmatpush.bf16.xpose.msra.mxu0 %v657
        %667 = vmatmul.bf16.gmra.mxu0 %v654
        %v668 = vpop.f32.mrf.mxu0
        %v669 = vadd.f32 0.0, %v668
        %v670 = vpop.f32.mrf.mxu0
        %671 = vdwg.mxu0
        %v672 = vsel %vm414, %v669, -inf
        %673 = vmax.xlane.f32.xlu0 %v672
        %v674 = vpop.xlane.xlu0 %673
        %v675 = vsub.f32 %v669, %v674
        %v676 = vmul.f32 %v675, 1.442695
        %v677 = vpow.pop %v676
        %v678 = vsel %vm414, %v677, 0.0
        %679 = vadd.xlane.f32.xlu0 %v678
        %v680 = vpop.xlane.xlu0 %679
        %v681 = vrcp.pop %v680
        %v682 = vmul.f32 %v680, %v681
        %v683 = vsub.f32 1.0, %v682
        %v684 = vmul.f32 %v681, %v683
        %v685 = vadd.f32 %v681, %v684
        %vm686 = vweird.f32 %v680
        %vm687 = vweird.f32 %v681
        %vm688 = vmor %vm686, %vm687
        %v689 = vsel %vm688, %v681, %v685
        %v690 = vand.u32 2147483647, %v680
        %vm691 = vcmp.eq.f32.partialorder %v690, 8.507059e+37
        %v692 = vand.u32 %v680, 2147483648
        %v693 = vor.u32 1.1754944e-38, %v692
        %v694 = vsel %vm691, %v693, %v689
        %v695 = vmul.f32 %v677, %v694
        %s696 = scalar_lea.vmem %s352, 24 [#allocation6]
        %697 = vst.msk [vmem:[%s696] sm:$0xff] %vm414, %v695
        %v698 = vpack.c.bf16 %v695, %v695
        %v700 = vunpack.c.l.b16 %v642
        %v701 = vpack.c.b16 %v700, %v700
        %702 = vrot.lane.b32.xlu0 %v701, 116
        %v703 = vpop.permute.xlu0 %702
        %v705 = vsel %vm414, %v698, 0
        %v708 = vsel %vm444, %v703, 0
        %710 = vmatpush.bf16.msra.mxu0 0
        %711 = vmatpush.bf16.msra.mxu0 0
        %712 = vmatpush.bf16.msra.mxu0 0
        %713 = vmatpush.bf16.msra.mxu0 0
        %714 = vmatpush.bf16.msra.mxu0 0
        %715 = vmatpush.bf16.msra.mxu0 0
        %716 = vmatpush.bf16.msra.mxu0 0
        %717 = vmatpush.bf16.msra.mxu0 %v708
        %718 = vmatmul.bf16.gmra.mxu0 %v705
        %v719 = vpop.f32.mrf.mxu0
        %v720 = vadd.f32 0.0, %v719
        %v721 = vpop.f32.mrf.mxu0
        %722 = vdwg.mxu0
        %724 = vrot.lane.b32.xlu0 %v720, 12
        %v725 = vpop.permute.xlu0 %724
        %vm727 = vcmask 130144
        %728 = vst.msk [vmem:[#allocation2] sm:$0xff] %vm727, %v725
        %v729 = vld [vmem:[%s362] sm:$0xf]
        %v730 = vld [vmem:[%s369] sm:$0xf]
        %v731 = vld [vmem:[%s376] sm:$0xf]
        %v733 = vunpack.c.l.b16 %v729
        %v734 = vpack.c.b16 %v733, %v733
        %735 = vrot.lane.b32.xlu0 %v734, 112
        %v736 = vpop.permute.xlu0 %735
        %v738 = vunpack.c.l.b16 %v730
        %v739 = vpack.c.b16 %v738, %v738
        %740 = vrot.lane.b32.xlu0 %v739, 112
        %v741 = vpop.permute.xlu0 %740
        %v743 = vsel %vm394, %v736, 0
        %v746 = vsel %vm394, %v741, 0
        %748 = vmatpush.bf16.xpose.msra.mxu0 0
        %749 = vmatpush.bf16.xpose.msra.mxu0 0
        %750 = vmatpush.bf16.xpose.msra.mxu0 0
        %751 = vmatpush.bf16.xpose.msra.mxu0 0
        %752 = vmatpush.bf16.xpose.msra.mxu0 0
        %753 = vmatpush.bf16.xpose.msra.mxu0 0
        %754 = vmatpush.bf16.xpose.msra.mxu0 0
        %755 = vmatpush.bf16.xpose.msra.mxu0 %v746
        %756 = vmatmul.bf16.gmra.mxu0 %v743
        %v757 = vpop.f32.mrf.mxu0
        %v758 = vadd.f32 0.0, %v757
        %v759 = vpop.f32.mrf.mxu0
        %760 = vdwg.mxu0
        %v761 = vsel %vm414, %v758, -inf
        %762 = vmax.xlane.f32.xlu0 %v761
        %v763 = vpop.xlane.xlu0 %762
        %v764 = vsub.f32 %v758, %v763
        %v765 = vmul.f32 %v764, 1.442695
        %v766 = vpow.pop %v765
        %v767 = vsel %vm414, %v766, 0.0
        %768 = vadd.xlane.f32.xlu0 %v767
        %v769 = vpop.xlane.xlu0 %768
        %v770 = vrcp.pop %v769
        %v771 = vmul.f32 %v769, %v770
        %v772 = vsub.f32 1.0, %v771
        %v773 = vmul.f32 %v770, %v772
        %v774 = vadd.f32 %v770, %v773
        %vm775 = vweird.f32 %v769
        %vm776 = vweird.f32 %v770
        %vm777 = vmor %vm775, %vm776
        %v778 = vsel %vm777, %v770, %v774
        %v779 = vand.u32 2147483647, %v769
        %vm780 = vcmp.eq.f32.partialorder %v779, 8.507059e+37
        %v781 = vand.u32 %v769, 2147483648
        %v782 = vor.u32 1.1754944e-38, %v781
        %v783 = vsel %vm780, %v782, %v778
        %v784 = vmul.f32 %v766, %v783
        %s785 = scalar_lea.vmem %s352, 32 [#allocation6]
        %786 = vst.msk [vmem:[%s785] sm:$0xff] %vm414, %v784
        %v787 = vpack.c.bf16 %v784, %v784
        %v789 = vunpack.c.l.b16 %v731
        %v790 = vpack.c.b16 %v789, %v789
        %791 = vrot.lane.b32.xlu0 %v790, 112
        %v792 = vpop.permute.xlu0 %791
        %v794 = vsel %vm414, %v787, 0
        %v797 = vsel %vm444, %v792, 0
        %799 = vmatpush.bf16.msra.mxu0 0
        %800 = vmatpush.bf16.msra.mxu0 0
        %801 = vmatpush.bf16.msra.mxu0 0
        %802 = vmatpush.bf16.msra.mxu0 0
        %803 = vmatpush.bf16.msra.mxu0 0
        %804 = vmatpush.bf16.msra.mxu0 0
        %805 = vmatpush.bf16.msra.mxu0 0
        %806 = vmatpush.bf16.msra.mxu0 %v797
        %807 = vmatmul.bf16.gmra.mxu0 %v794
        %v808 = vpop.f32.mrf.mxu0
        %v809 = vadd.f32 0.0, %v808
        %v810 = vpop.f32.mrf.mxu0
        %811 = vdwg.mxu0
        %813 = vrot.lane.b32.xlu0 %v809, 16
        %v814 = vpop.permute.xlu0 %813
        %vm816 = vcmask 162944
        %817 = vst.msk [vmem:[#allocation2] sm:$0xff] %vm816, %v814
        %v818 = vld [vmem:[%s362] sm:$0xf]
        %v819 = vld [vmem:[%s369] sm:$0xf]
        %v820 = vld [vmem:[%s376] sm:$0xf]
        %v822 = vunpack.c.l.b16 %v818
        %v823 = vpack.c.b16 %v822, %v822
        %824 = vrot.lane.b32.xlu0 %v823, 108
        %v825 = vpop.permute.xlu0 %824
        %v827 = vunpack.c.l.b16 %v819
        %v828 = vpack.c.b16 %v827, %v827
        %829 = vrot.lane.b32.xlu0 %v828, 108
        %v830 = vpop.permute.xlu0 %829
        %v832 = vsel %vm394, %v825, 0
        %v835 = vsel %vm394, %v830, 0
        %837 = vmatpush.bf16.xpose.msra.mxu0 0
        %838 = vmatpush.bf16.xpose.msra.mxu0 0
        %839 = vmatpush.bf16.xpose.msra.mxu0 0
        %840 = vmatpush.bf16.xpose.msra.mxu0 0
        %841 = vmatpush.bf16.xpose.msra.mxu0 0
        %842 = vmatpush.bf16.xpose.msra.mxu0 0
        %843 = vmatpush.bf16.xpose.msra.mxu0 0
        %844 = vmatpush.bf16.xpose.msra.mxu0 %v835
        %845 = vmatmul.bf16.gmra.mxu0 %v832
        %v846 = vpop.f32.mrf.mxu0
        %v847 = vadd.f32 0.0, %v846
        %v848 = vpop.f32.mrf.mxu0
        %849 = vdwg.mxu0
        %v850 = vsel %vm414, %v847, -inf
        %851 = vmax.xlane.f32.xlu0 %v850
        %v852 = vpop.xlane.xlu0 %851
        %v853 = vsub.f32 %v847, %v852
        %v854 = vmul.f32 %v853, 1.442695
        %v855 = vpow.pop %v854
        %v856 = vsel %vm414, %v855, 0.0
        %857 = vadd.xlane.f32.xlu0 %v856
        %v858 = vpop.xlane.xlu0 %857
        %v859 = vrcp.pop %v858
        %v860 = vmul.f32 %v858, %v859
        %v861 = vsub.f32 1.0, %v860
        %v862 = vmul.f32 %v859, %v861
        %v863 = vadd.f32 %v859, %v862
        %vm864 = vweird.f32 %v858
        %vm865 = vweird.f32 %v859
        %vm866 = vmor %vm864, %vm865
        %v867 = vsel %vm866, %v859, %v863
        %v868 = vand.u32 2147483647, %v858
        %vm869 = vcmp.eq.f32.partialorder %v868, 8.507059e+37
        %v870 = vand.u32 %v858, 2147483648
        %v871 = vor.u32 1.1754944e-38, %v870
        %v872 = vsel %vm869, %v871, %v867
        %v873 = vmul.f32 %v855, %v872
        %s874 = scalar_lea.vmem %s352, 40 [#allocation6]
        %875 = vst.msk [vmem:[%s874] sm:$0xff] %vm414, %v873
        %v876 = vpack.c.bf16 %v873, %v873
        %v878 = vunpack.c.l.b16 %v820
        %v879 = vpack.c.b16 %v878, %v878
        %880 = vrot.lane.b32.xlu0 %v879, 108
        %v881 = vpop.permute.xlu0 %880
        %v883 = vsel %vm414, %v876, 0
        %v886 = vsel %vm444, %v881, 0
        %888 = vmatpush.bf16.msra.mxu0 0
        %889 = vmatpush.bf16.msra.mxu0 0
        %890 = vmatpush.bf16.msra.mxu0 0
        %891 = vmatpush.bf16.msra.mxu0 0
        %892 = vmatpush.bf16.msra.mxu0 0
        %893 = vmatpush.bf16.msra.mxu0 0
        %894 = vmatpush.bf16.msra.mxu0 0
        %895 = vmatpush.bf16.msra.mxu0 %v886
        %896 = vmatmul.bf16.gmra.mxu0 %v883
        %v897 = vpop.f32.mrf.mxu0
        %v898 = vadd.f32 0.0, %v897
        %v899 = vpop.f32.mrf.mxu0
        %900 = vdwg.mxu0
        %902 = vrot.lane.b32.xlu0 %v898, 20
        %v903 = vpop.permute.xlu0 %902
        %vm905 = vcmask 195744
        %906 = vst.msk [vmem:[#allocation2] sm:$0xff] %vm905, %v903
        %v907 = vld [vmem:[%s362] sm:$0xf]
        %v908 = vld [vmem:[%s369] sm:$0xf]
        %v909 = vld [vmem:[%s376] sm:$0xf]
        %v911 = vunpack.c.l.b16 %v907
        %v912 = vpack.c.b16 %v911, %v911
        %913 = vrot.lane.b32.xlu0 %v912, 104
        %v914 = vpop.permute.xlu0 %913
        %v916 = vunpack.c.l.b16 %v908
        %v917 = vpack.c.b16 %v916, %v916
        %918 = vrot.lane.b32.xlu0 %v917, 104
        %v919 = vpop.permute.xlu0 %918
        %v921 = vsel %vm394, %v914, 0
        %v924 = vsel %vm394, %v919, 0
        %926 = vmatpush.bf16.xpose.msra.mxu0 0
        %927 = vmatpush.bf16.xpose.msra.mxu0 0
        %928 = vmatpush.bf16.xpose.msra.mxu0 0
        %929 = vmatpush.bf16.xpose.msra.mxu0 0
        %930 = vmatpush.bf16.xpose.msra.mxu0 0
        %931 = vmatpush.bf16.xpose.msra.mxu0 0
        %932 = vmatpush.bf16.xpose.msra.mxu0 0
        %933 = vmatpush.bf16.xpose.msra.mxu0 %v924
        %934 = vmatmul.bf16.gmra.mxu0 %v921
        %v935 = vpop.f32.mrf.mxu0
        %v936 = vadd.f32 0.0, %v935
        %v937 = vpop.f32.mrf.mxu0
        %938 = vdwg.mxu0
        %v939 = vsel %vm414, %v936, -inf
        %940 = vmax.xlane.f32.xlu0 %v939
        %v941 = vpop.xlane.xlu0 %940
        %v942 = vsub.f32 %v936, %v941
        %v943 = vmul.f32 %v942, 1.442695
        %v944 = vpow.pop %v943
        %v945 = vsel %vm414, %v944, 0.0
        %946 = vadd.xlane.f32.xlu0 %v945
        %v947 = vpop.xlane.xlu0 %946
        %v948 = vrcp.pop %v947
        %v949 = vmul.f32 %v947, %v948
        %v950 = vsub.f32 1.0, %v949
        %v951 = vmul.f32 %v948, %v950
        %v952 = vadd.f32 %v948, %v951
        %vm953 = vweird.f32 %v947
        %vm954 = vweird.f32 %v948
        %vm955 = vmor %vm953, %vm954
        %v956 = vsel %vm955, %v948, %v952
        %v957 = vand.u32 2147483647, %v947
        %vm958 = vcmp.eq.f32.partialorder %v957, 8.507059e+37
        %v959 = vand.u32 %v947, 2147483648
        %v960 = vor.u32 1.1754944e-38, %v959
        %v961 = vsel %vm958, %v960, %v956
        %v962 = vmul.f32 %v944, %v961
        %s963 = scalar_lea.vmem %s352, 48 [#allocation6]
        %964 = vst.msk [vmem:[%s963] sm:$0xff] %vm414, %v962
        %v965 = vpack.c.bf16 %v962, %v962
        %v967 = vunpack.c.l.b16 %v909
        %v968 = vpack.c.b16 %v967, %v967
        %969 = vrot.lane.b32.xlu0 %v968, 104
        %v970 = vpop.permute.xlu0 %969
        %v972 = vsel %vm414, %v965, 0
        %v975 = vsel %vm444, %v970, 0
        %977 = vmatpush.bf16.msra.mxu0 0
        %978 = vmatpush.bf16.msra.mxu0 0
        %979 = vmatpush.bf16.msra.mxu0 0
        %980 = vmatpush.bf16.msra.mxu0 0
        %981 = vmatpush.bf16.msra.mxu0 0
        %982 = vmatpush.bf16.msra.mxu0 0
        %983 = vmatpush.bf16.msra.mxu0 0
        %984 = vmatpush.bf16.msra.mxu0 %v975
        %985 = vmatmul.bf16.gmra.mxu0 %v972
        %v986 = vpop.f32.mrf.mxu0
        %v987 = vadd.f32 0.0, %v986
        %v988 = vpop.f32.mrf.mxu0
        %989 = vdwg.mxu0
        %991 = vrot.lane.b32.xlu0 %v987, 24
        %v992 = vpop.permute.xlu0 %991
        %vm994 = vcmask 228544
        %995 = vst.msk [vmem:[#allocation2] sm:$0xff] %vm994, %v992
        %v996 = vld [vmem:[%s362] sm:$0xf]
        %v997 = vld [vmem:[%s369] sm:$0xf]
        %v998 = vld [vmem:[%s376] sm:$0xf]
        %v1000 = vunpack.c.l.b16 %v996
        %v1001 = vpack.c.b16 %v1000, %v1000
        %1002 = vrot.lane.b32.xlu0 %v1001, 100
        %v1003 = vpop.permute.xlu0 %1002
        %v1005 = vunpack.c.l.b16 %v997
        %v1006 = vpack.c.b16 %v1005, %v1005
        %1007 = vrot.lane.b32.xlu0 %v1006, 100
        %v1008 = vpop.permute.xlu0 %1007
        %v1010 = vsel %vm394, %v1003, 0
        %v1013 = vsel %vm394, %v1008, 0
        %1015 = vmatpush.bf16.xpose.msra.mxu0 0
        %1016 = vmatpush.bf16.xpose.msra.mxu0 0
        %1017 = vmatpush.bf16.xpose.msra.mxu0 0
        %1018 = vmatpush.bf16.xpose.msra.mxu0 0
        %1019 = vmatpush.bf16.xpose.msra.mxu0 0
        %1020 = vmatpush.bf16.xpose.msra.mxu0 0
        %1021 = vmatpush.bf16.xpose.msra.mxu0 0
        %1022 = vmatpush.bf16.xpose.msra.mxu0 %v1013
        %1023 = vmatmul.bf16.gmra.mxu0 %v1010
        %v1024 = vpop.f32.mrf.mxu0
        %v1025 = vadd.f32 0.0, %v1024
        %v1026 = vpop.f32.mrf.mxu0
        %1027 = vdwg.mxu0
        %v1028 = vsel %vm414, %v1025, -inf
        %1029 = vmax.xlane.f32.xlu0 %v1028
        %v1030 = vpop.xlane.xlu0 %1029
        %v1031 = vsub.f32 %v1025, %v1030
        %v1032 = vmul.f32 %v1031, 1.442695
        %v1033 = vpow.pop %v1032
        %v1034 = vsel %vm414, %v1033, 0.0
        %1035 = vadd.xlane.f32.xlu0 %v1034
        %v1036 = vpop.xlane.xlu0 %1035
        %v1037 = vrcp.pop %v1036
        %v1038 = vmul.f32 %v1036, %v1037
        %v1039 = vsub.f32 1.0, %v1038
        %v1040 = vmul.f32 %v1037, %v1039
        %v1041 = vadd.f32 %v1037, %v1040
        %vm1042 = vweird.f32 %v1036
        %vm1043 = vweird.f32 %v1037
        %vm1044 = vmor %vm1042, %vm1043
        %v1045 = vsel %vm1044, %v1037, %v1041
        %v1046 = vand.u32 2147483647, %v1036
        %vm1047 = vcmp.eq.f32.partialorder %v1046, 8.507059e+37
        %v1048 = vand.u32 %v1036, 2147483648
        %v1049 = vor.u32 1.1754944e-38, %v1048
        %v1050 = vsel %vm1047, %v1049, %v1045
        %v1051 = vmul.f32 %v1033, %v1050
        %s1052 = scalar_lea.vmem %s352, 56 [#allocation6]
        %1053 = vst.msk [vmem:[%s1052] sm:$0xff] %vm414, %v1051
        %v1054 = vpack.c.bf16 %v1051, %v1051
        %v1056 = vunpack.c.l.b16 %v998
        %v1057 = vpack.c.b16 %v1056, %v1056
        %1058 = vrot.lane.b32.xlu0 %v1057, 100
        %v1059 = vpop.permute.xlu0 %1058
        %v1061 = vsel %vm414, %v1054, 0
        %v1064 = vsel %vm444, %v1059, 0
        %1066 = vmatpush.bf16.msra.mxu0 0
        %1067 = vmatpush.bf16.msra.mxu0 0
        %1068 = vmatpush.bf16.msra.mxu0 0
        %1069 = vmatpush.bf16.msra.mxu0 0
        %1070 = vmatpush.bf16.msra.mxu0 0
        %1071 = vmatpush.bf16.msra.mxu0 0
        %1072 = vmatpush.bf16.msra.mxu0 0
        %1073 = vmatpush.bf16.msra.mxu0 %v1064
        %1074 = vmatmul.bf16.gmra.mxu0 %v1061
        %v1075 = vpop.f32.mrf.mxu0
        %v1076 = vadd.f32 0.0, %v1075
        %v1077 = vpop.f32.mrf.mxu0
        %1078 = vdwg.mxu0
        %1080 = vrot.lane.b32.xlu0 %v1076, 28
        %v1081 = vpop.permute.xlu0 %1080
        %vm1083 = vcmask 261344
        %1084 = vst.msk [vmem:[#allocation2] sm:$0xff] %vm1083, %v1081
        %v1085 = vld [vmem:[#allocation3] sm:$0xff]
        %v1086 = vld [vmem:[#allocation2] sm:$0xff]
        %v1087 = vpack.c.bf16 %v1086, %v1086
        %v1088 = vld [vmem:[%s381] sm:$0xf]
        %v1089 = vld [vmem:[%s381 + $0x4] sm:$0xf]
        %v1090 = vld [vmem:[%s381 + $0x8] sm:$0xf]
        %v1091 = vld [vmem:[%s381 + $0xc] sm:$0xf]
        %v1096 = vunpack.c.l.b16 %v1088
        %v1097 = vunpack.c.l.b16 %v1089
        %v1098 = vunpack.c.l.b16 %v1090
        %v1099 = vunpack.c.l.b16 %v1091
        %v1100 = vpack.c.b16 %v1097, %v1096
        %v1101 = vpack.c.b16 %v1099, %v1098
        %vm1104 = vcmask 261120
        %v1106 = vsel %vm1104, %v1087, 0
        %1108 = vmatpush.bf16.msra.mxu0 0
        %1109 = vmatpush.bf16.msra.mxu0 0
        %1110 = vmatpush.bf16.msra.mxu0 0
        %1111 = vmatpush.bf16.msra.mxu0 0
        %1112 = vmatpush.bf16.msra.mxu0 0
        %1113 = vmatpush.bf16.msra.mxu0 0
        %1114 = vmatpush.bf16.msra.mxu0 %v1101
        %1115 = vmatpush.bf16.msra.mxu0 %v1100
        %1116 = vmatmul.bf16.gmra.mxu0 %v1106
        %v1117 = vpop.f32.mrf.mxu0
        %v1118 = vadd.f32 0.0, %v1117
        %v1119 = vpop.f32.mrf.mxu0
        %1120 = vdwg.mxu0
        %v1121 = vadd.f32 %v1085, %v1118
        %1122 = vst.msk [vmem:[#allocation3] sm:$0xff] %vm1104, %v1121
        // Predicated region
        $region45: #{multi_head_cross_attention.3} parent=39 // pred_check
          %p1123 = pneg %p385
        $region46: #{multi_head_cross_attention.3} parent=39 // pred_check_branch
          %1125 = sbr.rel (%p1123) target = $region48
        $region47: #{multi_head_cross_attention.3} parent=39 // pred_region
          %v1126 = vld [vmem:[#allocation3] sm:$0xff]
          %v1127 = vld [vmem:[%s4] sm:$0x1]
          %v1129 = vperm.slane %v1127, 0
          %v1131 = vadd.f32 %v1126, %v1129
          %1132 = vst.msk [vmem:[%s345] sm:$0xff] %vm1104, %v1131
        $region48: #{multi_head_cross_attention.3} parent=39 // pred_fallthru
          _
        %s1133 = sand.u32 %s186, 1
        %s1134 = scalar_lea.sflag [#allocation5], %s1133
        %s1135 = sand.u32 %s186, 1
        %s1136 = smul.addr %s1135, 8
        %s1137 = scalar_lea.vmem [#allocation4], %s1136
        %s1138 = sand.u32 %s216, 1
        %s1139 = scalar_lea.sflag [#allocation7], %s1138
        %s1140 = sand.u32 %s216, 1
        %s1141 = smul.addr %s1140, 64
        %s1142 = scalar_lea.vmem [#allocation6], %s1141
        // Predicated region
        $region49: #{multi_head_cross_attention.3} parent=39 // pred_check
          %p1143 = pneg %p196
        $region50: #{multi_head_cross_attention.3} parent=39 // pred_check_branch
          %1145 = sbr.rel (%p1143) target = $region52
        $region51: #{multi_head_cross_attention.3} parent=39 // pred_region
          %1147 = vsyncadd %s1134, 0
          %s1148 = sadd.s32 %s30, %s29
          %s1149 = smul.addr %s1148, 8
          %s1150 = scalar_lea.hbm %s5, %s1149
          %s1152 = sshll.u32 %s1137, 4
          %s1153 = int_to_ptr.vmem [resolvable:$true] %s1152
          %s1154 = sshll.u32 %s1150, 4
          %s1155 = int_to_ptr.hbm [resolvable:$true] %s1154
          %1157 = dma.vmem_to_hbm [thread:$0]  %s1153, 128, %s1155, %s1134
        $region52: #{multi_head_cross_attention.3} parent=39 // pred_fallthru
          _
        // Predicated region
        $region53: #{multi_head_cross_attention.3} parent=39 // pred_check
          %p1158 = pneg %p226
        $region54: #{multi_head_cross_attention.3} parent=39 // pred_check_branch
          %1160 = sbr.rel (%p1158) target = $region56
        $region55: #{multi_head_cross_attention.3} parent=39 // pred_region
          %s1161 = smul.u32 8, %s31
          %1163 = vsyncadd %s1139, 0
          %s1164 = sadd.s32 %s30, %s1161
          %s1165 = smul.addr %s29, 8
          %s1166 = sadd.s32 %s1164, %s1165
          %s1167 = smul.addr %s1166, 8
          %s1168 = scalar_lea.hbm %s6, %s1167
          %s1169 = sshll.u32 %s1142, 4
          %s1170 = int_to_ptr.vmem [resolvable:$true] %s1169
          %s1171 = sshll.u32 %s1168, 4
          %s1172 = int_to_ptr.hbm [resolvable:$true] %s1171
          %1177 = dma.vmem_to_hbm [thread:$0]  %s1170, 1024, %s1172, %s1139, 128, 128, 8
        $region56: #{multi_head_cross_attention.3} parent=39 // pred_fallthru
          _
      $region40: #{multi_head_cross_attention.3} parent=5 // pred_fallthru
        _
      %p1178 = scmp.le.s32.totalorder 2, %s19
      // Predicated region
      $region57: #{multi_head_cross_attention.3} parent=5 // pred_check
        %p1179 = pneg %p1178
      $region58: #{multi_head_cross_attention.3} parent=5 // pred_check_branch
        %1181 = sbr.rel (%p1179) target = $region60
      $region59: #{multi_head_cross_attention.3} parent=5 // pred_region
        %s1182 = ssub.s32 %s19, 2
        // Predicated region
        $region61: #{multi_head_cross_attention.3} parent=59 // pred_check
          %p1183 = pneg %p202
        $region62: #{multi_head_cross_attention.3} parent=59 // pred_check_branch
          %1185 = sbr.rel (%p1183) target = $region64
        $region63: #{multi_head_cross_attention.3} parent=59 // pred_region
          %s1186 = sand.u32 %s187, 1
          %s1187 = scalar_lea.sflag [#allocation5], %s1186
          %s1188 = sand.u32 %s187, 1
          %s1189 = smul.addr %s1188, 8
          %s1190 = scalar_lea.vmem [#allocation4], %s1189
          %1192 = dma.done %s1187, 128
        $region64: #{multi_head_cross_attention.3} parent=59 // pred_fallthru
          _
        // Predicated region
        $region65: #{multi_head_cross_attention.3} parent=59 // pred_check
          %p1193 = pneg %p232
        $region66: #{multi_head_cross_attention.3} parent=59 // pred_check_branch
          %1195 = sbr.rel (%p1193) target = $region68
        $region67: #{multi_head_cross_attention.3} parent=59 // pred_region
          %s1196 = sand.u32 %s217, 1
          %s1197 = scalar_lea.sflag [#allocation7], %s1196
          %s1198 = sand.u32 %s217, 1
          %s1199 = smul.addr %s1198, 64
          %s1200 = scalar_lea.vmem [#allocation6], %s1199
          %1202 = dma.done %s1197, 1024
        $region68: #{multi_head_cross_attention.3} parent=59 // pred_fallthru
          _
      $region60: #{multi_head_cross_attention.3} parent=5 // pred_fallthru
        _
    $region6: #{multi_head_cross_attention.3} parent=1 // loop_footer
      %s23 = sadd.s32 1, %s19
    $region7: #{multi_head_cross_attention.3} parent=1 // loop_footer_branch
      %18 = sbr.rel target = $region3
    $region8: #{multi_head_cross_attention.3} parent=1 // loop_exit
      _
    %1203 = vsyncpa [#allocation5], 1
    %s1204 = scalar_lea.sflag [#allocation5], 1
    %1205 = vsyncpa %s1204, 1
    %1206 = vsyncpa [#allocation7], 1
    %s1207 = scalar_lea.sflag [#allocation7], 1
    %1208 = vsyncpa %s1207, 1

</llo_original>
